<compile_context>
chip_gen: v7x
topology: tpu7x:2x2x1
jax: 0.10.0
libtpu: 0.0.40
codegen_flags: <defaults>
</compile_context>

<pallas_src>
import jax
import jax.numpy as jnp
from jax.experimental import pallas as pl
from jax.experimental.pallas import tpu as pltpu


# ----------------------------------------------------------------------------
# Fused Pallas kernel
# ----------------------------------------------------------------------------
def _mrn_fused_kernel(imgp_ref, pooled_ref,
                      vis_w_ref, vis_b_ref,
                      te_w_ref, te_b_ref,
                      wqr_ref, bqr_ref, w1_ref, b1_ref, w2_ref, b2_ref,
                      fc_w_ref, fc_b_ref,
                      o_ref):
    """Fused forward:
         x = imgp @ vis_w + vis_b                       (visual encoder, pooled)
         q = tanh(pooled @ te_w + te_b)                 (text encoder stand-in)
         for each block l:
           [question|res] = h @ [wq|wr] + [bq|br]       (single MXU pass)
           h = tanh(tanh(x@w1+b1)@w2+b2) * tanh(question) + res
         logits = h @ fc_w + fc_b
       All matmuls: bf16 operands, f32 accumulation. Elementwise in f32.
    """
    f32 = jnp.float32
    bf16 = jnp.bfloat16
    H = w2_ref.shape[-1]           # padded hidden width (multiple of 128)
    L = wqr_ref.shape[0]           # number of MRN blocks (static)

    # Visual features (pool already applied outside; exact reorder).
    x = jnp.dot(imgp_ref[...].astype(bf16), vis_w_ref[...],
                preferred_element_type=f32) + vis_b_ref[...]
    x_bf = x.astype(bf16)

    # Text-encoder stand-in: tanh(linear(mean-pooled embedding)).
    q = jnp.tanh(jnp.dot(pooled_ref[...].astype(bf16), te_w_ref[...],
                         preferred_element_type=f32) + te_b_ref[...])

    # Residual chain; h and x stay resident (no HBM round-trips between blocks).
    h = q
    for l in range(L):
        qr = jnp.dot(h.astype(bf16), wqr_ref[l],
                     preferred_element_type=f32) + bqr_ref[l]
        question = jnp.tanh(qr[:, :H])
        res = qr[:, H:]
        h1 = jnp.tanh(jnp.dot(x_bf, w1_ref[l],
                              preferred_element_type=f32) + b1_ref[l])
        objects = jnp.tanh(jnp.dot(h1.astype(bf16), w2_ref[l],
                                   preferred_element_type=f32) + b2_ref[l])
        h = objects * question + res

    logits = jnp.dot(h.astype(bf16), fc_w_ref[...],
                     preferred_element_type=f32) + fc_b_ref[...]
    o_ref[...] = logits.astype(o_ref.dtype)


# ----------------------------------------------------------------------------
# pallas_call wrapper
# ----------------------------------------------------------------------------
def _full_spec(shape):
    """Whole-array block; single grid step."""
    zeros = (0,) * len(shape)
    return pl.BlockSpec(shape, lambda *g: zeros)


def pallas_mrn_fused(imgp, pooled, prep):
    args = (imgp, pooled,
            prep["vis_w"], prep["vis_b"],
            prep["te_w"], prep["te_b"],
            prep["wqr"], prep["bqr"], prep["w1"], prep["b1"],
            prep["w2"], prep["b2"],
            prep["fc_w"], prep["fc_b"])
    B_pad = imgp.shape[0]
    C_pad = imgp.shape[1]
    E_pad = pooled.shape[1]
    F_pad = prep["vis_w"].shape[1]
    H_pad = prep["w2"].shape[-1]
    A_pad = prep["fc_w"].shape[1]
    L = prep["wqr"].shape[0]

    flops = 2 * B_pad * (C_pad * F_pad + E_pad * H_pad
                         + L * (H_pad * 2 * H_pad + F_pad * H_pad + H_pad * H_pad)
                         + H_pad * A_pad)
    transcendentals = B_pad * (H_pad + L * 3 * H_pad)
    bytes_accessed = sum(int(a.size) * a.dtype.itemsize for a in args) \
        + B_pad * A_pad * 4

    return pl.pallas_call(
        _mrn_fused_kernel,
        out_shape=jax.ShapeDtypeStruct((B_pad, A_pad), jnp.float32),
        grid=(1,),
        in_specs=[_full_spec(a.shape) for a in args],
        out_specs=_full_spec((B_pad, A_pad)),
        compiler_params=pltpu.CompilerParams(
            dimension_semantics=("arbitrary",)),
        cost_estimate=pl.CostEstimate(
            flops=int(flops),
            transcendentals=int(transcendentals),
            bytes_accessed=int(bytes_accessed)),
    )(*args)


# ----------------------------------------------------------------------------
# Parameter init (deterministic, synthetic) - logical (unpadded) shapes
# ----------------------------------------------------------------------------
def _linear_params(key, fan_in, fan_out):
    kw, kb = jax.random.split(key)
    scale = 1.0 / jnp.sqrt(jnp.float32(fan_in))
    w = jax.random.uniform(kw, (fan_in, fan_out), jnp.float32, -scale, scale)
    b = jax.random.uniform(kb, (1, fan_out), jnp.float32, -scale, scale)
    return w, b


def _mrn_block_params(key, i_dim, q_dim, h_dim):
    k1, k2, k3, k4 = jax.random.split(key, 4)
    wq, bq = _linear_params(k1, q_dim, h_dim)
    w1, b1 = _linear_params(k2, i_dim, h_dim)
    w2, b2 = _linear_params(k3, h_dim, h_dim)
    wr, br = _linear_params(k4, q_dim, h_dim)
    return dict(wq=wq, bq=bq, w1=w1, b1=b1, w2=w2, b2=b2, wr=wr, br=br)


def init_mrn_params(key, *, vocab, emb, te_hidden, filters, mrn_hidden,
                    mrn_layer, a_size, img_channels):
    keys = jax.random.split(key, 6 + mrn_layer)
    params = {}
    # TODO(synk): pretrained ResNet (load_pretrained_conv) replaced by a
    # 1x1-conv + global-average-pool stand-in producing [B, filters].
    params["vis_w"], params["vis_b"] = _linear_params(keys[0], img_channels, filters)
    # TODO(synk): recurrent (GRU/LSTM) TextEncoder replaced by masked mean-pooled
    # embeddings + tanh(Linear) stand-in producing [B, te_hidden].
    params["embedding"] = jax.random.normal(keys[1], (vocab, emb), jnp.float32) * 0.1
    params["te_w"], params["te_b"] = _linear_params(keys[2], emb, te_hidden)
    params["first_block"] = _mrn_block_params(keys[3], filters, te_hidden, mrn_hidden)
    params["blocks"] = [
        _mrn_block_params(keys[4 + l], filters, mrn_hidden, mrn_hidden)
        for l in range(mrn_layer - 1)
    ]
    params["fc_w"], params["fc_b"] = _linear_params(keys[4 + mrn_layer], mrn_hidden, a_size)
    return params


# ----------------------------------------------------------------------------
# Pad / stack / cast params for the fused kernel (done once)
# ----------------------------------------------------------------------------
def _round_up(n, m):
    return ((n + m - 1) // m) * m


def _pad_to(a, shape):
    pads = [(0, t - s) for s, t in zip(a.shape, shape)]
    return jnp.pad(a, pads)


def prepare_fused_params(params, *, batch, a_size):
    bf16 = jnp.bfloat16
    C, F = params["vis_w"].shape
    E, TE = params["te_w"].shape
    H = params["first_block"]["w2"].shape[1]

    B_pad = max(8, _round_up(batch, 8))     # sublane multiple for f32
    C_pad = _round_up(C, 128)
    F_pad = _round_up(F, 128)
    E_pad = _round_up(E, 128)
    H_pad = _round_up(H, 128)
    A_pad = _round_up(a_size, 128)
    # te_hidden and mrn_hidden must share a padded width so blocks stack uniformly.
    assert _round_up(TE, 128) == H_pad

    prep = dict(B_pad=B_pad, C_pad=C_pad, E_pad=E_pad, F_pad=F_pad,
                H_pad=H_pad, A_pad=A_pad, a_size=a_size)

    prep["vis_w"] = _pad_to(params["vis_w"], (C_pad, F_pad)).astype(bf16)
    prep["vis_b"] = _pad_to(params["vis_b"], (1, F_pad))
    prep["te_w"] = _pad_to(params["te_w"], (E_pad, H_pad)).astype(bf16)
    prep["te_b"] = _pad_to(params["te_b"], (1, H_pad))

    blocks = [params["first_block"]] + list(params["blocks"])
    wqr, bqr, w1, b1, w2, b2 = [], [], [], [], [], []
    for blk in blocks:
        wq = _pad_to(blk["wq"], (H_pad, H_pad))
        wr = _pad_to(blk["wr"], (H_pad, H_pad))
        wqr.append(jnp.concatenate([wq, wr], axis=1))          # [H_pad, 2*H_pad]
        bqr.append(jnp.concatenate([_pad_to(blk["bq"], (1, H_pad)),
                                    _pad_to(blk["br"], (1, H_pad))], axis=1))
        w1.append(_pad_to(blk["w1"], (F_pad, H_pad)))
        b1.append(_pad_to(blk["b1"], (1, H_pad)))
        w2.append(_pad_to(blk["w2"], (H_pad, H_pad)))
        b2.append(_pad_to(blk["b2"], (1, H_pad)))
    prep["wqr"] = jnp.stack(wqr).astype(bf16)   # [L, H_pad, 2*H_pad]
    prep["bqr"] = jnp.stack(bqr)                # [L, 1, 2*H_pad]
    prep["w1"] = jnp.stack(w1).astype(bf16)     # [L, F_pad, H_pad]
    prep["b1"] = jnp.stack(b1)
    prep["w2"] = jnp.stack(w2).astype(bf16)     # [L, H_pad, H_pad]
    prep["b2"] = jnp.stack(b2)

    prep["fc_w"] = _pad_to(params["fc_w"], (H_pad, A_pad)).astype(bf16)
    prep["fc_b"] = _pad_to(params["fc_b"], (1, A_pad))
    return prep


# ----------------------------------------------------------------------------
# Forward pass (mirrors Mrn.forward)
# ----------------------------------------------------------------------------
def mrn_forward(prep, embedding, image, question, question_length):
    B = image.shape[0]

    # visual_encoder(image).squeeze(3).squeeze(2)
    # Pool over spatial dims FIRST (exact: mean and 1x1-conv commute), the
    # [B, C] @ [C, filters] matmul happens inside the fused kernel.
    imgp = jnp.mean(image, axis=(2, 3))                                   # [B, C]
    imgp = _pad_to(imgp, (prep["B_pad"], prep["C_pad"]))

    # text_encoder(question, question_length) -> q  (embedding gather + masked
    # mean-pool done in XLA; the tanh(Linear) lives inside the fused kernel).
    emb = embedding[question]                                             # [B, S, E]
    S = question.shape[1]
    mask = (jnp.arange(S)[None, :] < question_length[:, None]).astype(jnp.float32)
    denom = jnp.maximum(question_length.astype(jnp.float32), 1.0)[:, None]
    pooled = (emb * mask[..., None]).sum(axis=1) / denom                  # [B, E]
    pooled = _pad_to(pooled, (prep["B_pad"], prep["E_pad"]))

    # Fused: visual matmul + te linear + all MrnBlocks + fc, one pallas_call.
    logits_pad = pallas_mrn_fused(imgp, pooled, prep)                     # [B_pad, A_pad]
    return logits_pad[:B, :prep["a_size"]]


# ----------------------------------------------------------------------------
# main
# ----------------------------------------------------------------------------
if __name__ == "__main__":
    # Small, module-consistent sizes (filters downsized from 1024/2048 for test).
    B, C, Himg, Wimg = 2, 3, 16, 16
    seq_len = 8
    vocab = 50
    emb = 16
    te_hidden = 32
    filters = 64
    mrn_hidden = 32
    mrn_layer = 3
    a_size = 10

    key = jax.random.PRNGKey(0)
    kp, ki, kq = jax.random.split(key, 3)

    params = init_mrn_params(
        kp, vocab=vocab, emb=emb, te_hidden=te_hidden, filters=filters,
        mrn_hidden=mrn_hidden, mrn_layer=mrn_layer, a_size=a_size,
        img_channels=C)
    prep = prepare_fused_params(params, batch=B, a_size=a_size)

    image = jax.random.normal(ki, (B, C, Himg, Wimg), jnp.float32)        # NCHW
    question = jax.random.randint(kq, (B, seq_len), 0, vocab, jnp.int32)  # token ids
    question_length = jnp.array([seq_len, seq_len - 3], dtype=jnp.int32)

    fwd = jax.jit(lambda img, qst, qlen: mrn_forward(
        prep, params["embedding"], img, qst, qlen))
    logits = fwd(image, question, question_length)
    logits = jax.block_until_ready(logits)

    assert logits.shape == (B, a_size), logits.shape
    assert bool(jnp.all(jnp.isfinite(logits)))
    print("KERNEL_OK")
</pallas_src>

<mosaic_0001>
module attributes {stable_mosaic.version = 11 : i64} {
  func.func @_mrn_fused_kernel(%arg0: i32, %arg1: memref<8x128xf32, #tpu.memory_space<vmem>>, %arg2: memref<8x128xf32, #tpu.memory_space<vmem>>, %arg3: memref<128x128xbf16, #tpu.memory_space<vmem>>, %arg4: memref<1x128xf32, #tpu.memory_space<vmem>>, %arg5: memref<128x128xbf16, #tpu.memory_space<vmem>>, %arg6: memref<1x128xf32, #tpu.memory_space<vmem>>, %arg7: memref<3x128x256xbf16, #tpu.memory_space<vmem>>, %arg8: memref<3x1x256xf32, #tpu.memory_space<vmem>>, %arg9: memref<3x128x128xbf16, #tpu.memory_space<vmem>>, %arg10: memref<3x1x128xf32, #tpu.memory_space<vmem>>, %arg11: memref<3x128x128xbf16, #tpu.memory_space<vmem>>, %arg12: memref<3x1x128xf32, #tpu.memory_space<vmem>>, %arg13: memref<128x128xbf16, #tpu.memory_space<vmem>>, %arg14: memref<1x128xf32, #tpu.memory_space<vmem>>, %arg15: memref<8x128xf32, #tpu.memory_space<vmem>>) attributes {dimension_semantics = [#tpu.dimension_semantics<arbitrary>], iteration_bounds = array<i64: 1>, scalar_prefetch = 0 : i64, scratch_operands = 0 : i64, tpu.core_type = #tpu.core_type<tc>, window_params = [{pipeline_mode = #tpu.pipeline_mode<synchronous>, transform_indices = @transform_0, window_bounds = array<i64: 8, 128>}, {pipeline_mode = #tpu.pipeline_mode<synchronous>, transform_indices = @transform_1, window_bounds = array<i64: 8, 128>}, {pipeline_mode = #tpu.pipeline_mode<synchronous>, transform_indices = @transform_2, window_bounds = array<i64: 128, 128>}, {pipeline_mode = #tpu.pipeline_mode<synchronous>, transform_indices = @transform_3, window_bounds = array<i64: 1, 128>}, {pipeline_mode = #tpu.pipeline_mode<synchronous>, transform_indices = @transform_4, window_bounds = array<i64: 128, 128>}, {pipeline_mode = #tpu.pipeline_mode<synchronous>, transform_indices = @transform_5, window_bounds = array<i64: 1, 128>}, {pipeline_mode = #tpu.pipeline_mode<synchronous>, transform_indices = @transform_6, window_bounds = array<i64: 3, 128, 256>}, {pipeline_mode = #tpu.pipeline_mode<synchronous>, transform_indices = @transform_7, window_bounds = array<i64: 3, 1, 256>}, {pipeline_mode = #tpu.pipeline_mode<synchronous>, transform_indices = @transform_8, window_bounds = array<i64: 3, 128, 128>}, {pipeline_mode = #tpu.pipeline_mode<synchronous>, transform_indices = @transform_9, window_bounds = array<i64: 3, 1, 128>}, {pipeline_mode = #tpu.pipeline_mode<synchronous>, transform_indices = @transform_10, window_bounds = array<i64: 3, 128, 128>}, {pipeline_mode = #tpu.pipeline_mode<synchronous>, transform_indices = @transform_11, window_bounds = array<i64: 3, 1, 128>}, {pipeline_mode = #tpu.pipeline_mode<synchronous>, transform_indices = @transform_12, window_bounds = array<i64: 128, 128>}, {pipeline_mode = #tpu.pipeline_mode<synchronous>, transform_indices = @transform_13, window_bounds = array<i64: 1, 128>}, {pipeline_mode = #tpu.pipeline_mode<synchronous>, transform_indices = @transform_14, window_bounds = array<i64: 8, 128>}]} {
    %c0 = arith.constant 0 : index
    %c0_0 = arith.constant 0 : index
    %0 = vector.load %arg1[%c0, %c0_0] : memref<8x128xf32, #tpu.memory_space<vmem>>, vector<8x128xf32>
    %1 = arith.truncf %0 : vector<8x128xf32> to vector<8x128xbf16>
    %c0_1 = arith.constant 0 : index
    %c0_2 = arith.constant 0 : index
    %2 = vector.load %arg3[%c0_1, %c0_2] : memref<128x128xbf16, #tpu.memory_space<vmem>>, vector<128x128xbf16>
    %cst = arith.constant dense<0.000000e+00> : vector<8x128xf32>
    %3 = tpu.matmul %1, %2, %cst {dimension_numbers = #tpu.dot_dimension_numbers<[1], [0], [0], [1], [0, 0, 1, 1], [], []>} : vector<8x128xbf16>, vector<128x128xbf16>, vector<8x128xf32> -> vector<8x128xf32>
    %c0_3 = arith.constant 0 : index
    %c0_4 = arith.constant 0 : index
    %4 = vector.load %arg4[%c0_3, %c0_4] : memref<1x128xf32, #tpu.memory_space<vmem>>, vector<1x128xf32>
    %5 = vector.broadcast %4 : vector<1x128xf32> to vector<8x128xf32>
    %6 = arith.addf %3, %5 : vector<8x128xf32>
    %7 = arith.truncf %6 : vector<8x128xf32> to vector<8x128xbf16>
    %c0_5 = arith.constant 0 : index
    %c0_6 = arith.constant 0 : index
    %8 = vector.load %arg2[%c0_5, %c0_6] : memref<8x128xf32, #tpu.memory_space<vmem>>, vector<8x128xf32>
    %9 = arith.truncf %8 : vector<8x128xf32> to vector<8x128xbf16>
    %c0_7 = arith.constant 0 : index
    %c0_8 = arith.constant 0 : index
    %10 = vector.load %arg5[%c0_7, %c0_8] : memref<128x128xbf16, #tpu.memory_space<vmem>>, vector<128x128xbf16>
    %cst_9 = arith.constant dense<0.000000e+00> : vector<8x128xf32>
    %11 = tpu.matmul %9, %10, %cst_9 {dimension_numbers = #tpu.dot_dimension_numbers<[1], [0], [0], [1], [0, 0, 1, 1], [], []>} : vector<8x128xbf16>, vector<128x128xbf16>, vector<8x128xf32> -> vector<8x128xf32>
    %c0_10 = arith.constant 0 : index
    %c0_11 = arith.constant 0 : index
    %12 = vector.load %arg6[%c0_10, %c0_11] : memref<1x128xf32, #tpu.memory_space<vmem>>, vector<1x128xf32>
    %13 = vector.broadcast %12 : vector<1x128xf32> to vector<8x128xf32>
    %14 = arith.addf %11, %13 : vector<8x128xf32>
    %15 = math.tanh %14 : vector<8x128xf32>
    %16 = arith.truncf %15 : vector<8x128xf32> to vector<8x128xbf16>
    %c0_12 = arith.constant 0 : index
    %c0_13 = arith.constant 0 : index
    %c0_14 = arith.constant 0 : index
    %17 = vector.load %arg7[%c0_12, %c0_13, %c0_14] : memref<3x128x256xbf16, #tpu.memory_space<vmem>>, vector<1x128x256xbf16>
    %18 = vector.shape_cast %17 : vector<1x128x256xbf16> to vector<128x256xbf16>
    %cst_15 = arith.constant dense<0.000000e+00> : vector<8x256xf32>
    %19 = tpu.matmul %16, %18, %cst_15 {dimension_numbers = #tpu.dot_dimension_numbers<[1], [0], [0], [1], [0, 0, 1, 1], [], []>} : vector<8x128xbf16>, vector<128x256xbf16>, vector<8x256xf32> -> vector<8x256xf32>
    %c0_16 = arith.constant 0 : index
    %c0_17 = arith.constant 0 : index
    %c0_18 = arith.constant 0 : index
    %20 = vector.load %arg8[%c0_16, %c0_17, %c0_18] : memref<3x1x256xf32, #tpu.memory_space<vmem>>, vector<1x1x256xf32>
    %21 = vector.shape_cast %20 : vector<1x1x256xf32> to vector<1x256xf32>
    %22 = vector.broadcast %21 : vector<1x256xf32> to vector<8x256xf32>
    %23 = arith.addf %19, %22 : vector<8x256xf32>
    %24 = vector.extract_strided_slice %23 {offsets = [0, 0], sizes = [8, 128], strides = [1, 1]} : vector<8x256xf32> to vector<8x128xf32>
    %25 = math.tanh %24 : vector<8x128xf32>
    %26 = vector.extract_strided_slice %23 {offsets = [0, 128], sizes = [8, 128], strides = [1, 1]} : vector<8x256xf32> to vector<8x128xf32>
    %c0_19 = arith.constant 0 : index
    %c0_20 = arith.constant 0 : index
    %c0_21 = arith.constant 0 : index
    %27 = vector.load %arg9[%c0_19, %c0_20, %c0_21] : memref<3x128x128xbf16, #tpu.memory_space<vmem>>, vector<1x128x128xbf16>
    %28 = vector.shape_cast %27 : vector<1x128x128xbf16> to vector<128x128xbf16>
    %cst_22 = arith.constant dense<0.000000e+00> : vector<8x128xf32>
    %29 = tpu.matmul %7, %28, %cst_22 {dimension_numbers = #tpu.dot_dimension_numbers<[1], [0], [0], [1], [0, 0, 1, 1], [], []>} : vector<8x128xbf16>, vector<128x128xbf16>, vector<8x128xf32> -> vector<8x128xf32>
    %c0_23 = arith.constant 0 : index
    %c0_24 = arith.constant 0 : index
    %c0_25 = arith.constant 0 : index
    %30 = vector.load %arg10[%c0_23, %c0_24, %c0_25] : memref<3x1x128xf32, #tpu.memory_space<vmem>>, vector<1x1x128xf32>
    %31 = vector.shape_cast %30 : vector<1x1x128xf32> to vector<1x128xf32>
    %32 = vector.broadcast %31 : vector<1x128xf32> to vector<8x128xf32>
    %33 = arith.addf %29, %32 : vector<8x128xf32>
    %34 = math.tanh %33 : vector<8x128xf32>
    %35 = arith.truncf %34 : vector<8x128xf32> to vector<8x128xbf16>
    %c0_26 = arith.constant 0 : index
    %c0_27 = arith.constant 0 : index
    %c0_28 = arith.constant 0 : index
    %36 = vector.load %arg11[%c0_26, %c0_27, %c0_28] : memref<3x128x128xbf16, #tpu.memory_space<vmem>>, vector<1x128x128xbf16>
    %37 = vector.shape_cast %36 : vector<1x128x128xbf16> to vector<128x128xbf16>
    %cst_29 = arith.constant dense<0.000000e+00> : vector<8x128xf32>
    %38 = tpu.matmul %35, %37, %cst_29 {dimension_numbers = #tpu.dot_dimension_numbers<[1], [0], [0], [1], [0, 0, 1, 1], [], []>} : vector<8x128xbf16>, vector<128x128xbf16>, vector<8x128xf32> -> vector<8x128xf32>
    %c0_30 = arith.constant 0 : index
    %c0_31 = arith.constant 0 : index
    %c0_32 = arith.constant 0 : index
    %39 = vector.load %arg12[%c0_30, %c0_31, %c0_32] : memref<3x1x128xf32, #tpu.memory_space<vmem>>, vector<1x1x128xf32>
    %40 = vector.shape_cast %39 : vector<1x1x128xf32> to vector<1x128xf32>
    %41 = vector.broadcast %40 : vector<1x128xf32> to vector<8x128xf32>
    %42 = arith.addf %38, %41 : vector<8x128xf32>
    %43 = math.tanh %42 : vector<8x128xf32>
    %44 = arith.mulf %43, %25 : vector<8x128xf32>
    %45 = arith.addf %44, %26 : vector<8x128xf32>
    %46 = arith.truncf %45 : vector<8x128xf32> to vector<8x128xbf16>
    %c1 = arith.constant 1 : index
    %c0_33 = arith.constant 0 : index
    %c0_34 = arith.constant 0 : index
    %47 = vector.load %arg7[%c1, %c0_33, %c0_34] : memref<3x128x256xbf16, #tpu.memory_space<vmem>>, vector<1x128x256xbf16>
    %48 = vector.shape_cast %47 : vector<1x128x256xbf16> to vector<128x256xbf16>
    %cst_35 = arith.constant dense<0.000000e+00> : vector<8x256xf32>
    %49 = tpu.matmul %46, %48, %cst_35 {dimension_numbers = #tpu.dot_dimension_numbers<[1], [0], [0], [1], [0, 0, 1, 1], [], []>} : vector<8x128xbf16>, vector<128x256xbf16>, vector<8x256xf32> -> vector<8x256xf32>
    %c1_36 = arith.constant 1 : index
    %c0_37 = arith.constant 0 : index
    %c0_38 = arith.constant 0 : index
    %50 = vector.load %arg8[%c1_36, %c0_37, %c0_38] : memref<3x1x256xf32, #tpu.memory_space<vmem>>, vector<1x1x256xf32>
    %51 = vector.shape_cast %50 : vector<1x1x256xf32> to vector<1x256xf32>
    %52 = vector.broadcast %51 : vector<1x256xf32> to vector<8x256xf32>
    %53 = arith.addf %49, %52 : vector<8x256xf32>
    %54 = vector.extract_strided_slice %53 {offsets = [0, 0], sizes = [8, 128], strides = [1, 1]} : vector<8x256xf32> to vector<8x128xf32>
    %55 = math.tanh %54 : vector<8x128xf32>
    %56 = vector.extract_strided_slice %53 {offsets = [0, 128], sizes = [8, 128], strides = [1, 1]} : vector<8x256xf32> to vector<8x128xf32>
    %c1_39 = arith.constant 1 : index
    %c0_40 = arith.constant 0 : index
    %c0_41 = arith.constant 0 : index
    %57 = vector.load %arg9[%c1_39, %c0_40, %c0_41] : memref<3x128x128xbf16, #tpu.memory_space<vmem>>, vector<1x128x128xbf16>
    %58 = vector.shape_cast %57 : vector<1x128x128xbf16> to vector<128x128xbf16>
    %cst_42 = arith.constant dense<0.000000e+00> : vector<8x128xf32>
    %59 = tpu.matmul %7, %58, %cst_42 {dimension_numbers = #tpu.dot_dimension_numbers<[1], [0], [0], [1], [0, 0, 1, 1], [], []>} : vector<8x128xbf16>, vector<128x128xbf16>, vector<8x128xf32> -> vector<8x128xf32>
    %c1_43 = arith.constant 1 : index
    %c0_44 = arith.constant 0 : index
    %c0_45 = arith.constant 0 : index
    %60 = vector.load %arg10[%c1_43, %c0_44, %c0_45] : memref<3x1x128xf32, #tpu.memory_space<vmem>>, vector<1x1x128xf32>
    %61 = vector.shape_cast %60 : vector<1x1x128xf32> to vector<1x128xf32>
    %62 = vector.broadcast %61 : vector<1x128xf32> to vector<8x128xf32>
    %63 = arith.addf %59, %62 : vector<8x128xf32>
    %64 = math.tanh %63 : vector<8x128xf32>
    %65 = arith.truncf %64 : vector<8x128xf32> to vector<8x128xbf16>
    %c1_46 = arith.constant 1 : index
    %c0_47 = arith.constant 0 : index
    %c0_48 = arith.constant 0 : index
    %66 = vector.load %arg11[%c1_46, %c0_47, %c0_48] : memref<3x128x128xbf16, #tpu.memory_space<vmem>>, vector<1x128x128xbf16>
    %67 = vector.shape_cast %66 : vector<1x128x128xbf16> to vector<128x128xbf16>
    %cst_49 = arith.constant dense<0.000000e+00> : vector<8x128xf32>
    %68 = tpu.matmul %65, %67, %cst_49 {dimension_numbers = #tpu.dot_dimension_numbers<[1], [0], [0], [1], [0, 0, 1, 1], [], []>} : vector<8x128xbf16>, vector<128x128xbf16>, vector<8x128xf32> -> vector<8x128xf32>
    %c1_50 = arith.constant 1 : index
    %c0_51 = arith.constant 0 : index
    %c0_52 = arith.constant 0 : index
    %69 = vector.load %arg12[%c1_50, %c0_51, %c0_52] : memref<3x1x128xf32, #tpu.memory_space<vmem>>, vector<1x1x128xf32>
    %70 = vector.shape_cast %69 : vector<1x1x128xf32> to vector<1x128xf32>
    %71 = vector.broadcast %70 : vector<1x128xf32> to vector<8x128xf32>
    %72 = arith.addf %68, %71 : vector<8x128xf32>
    %73 = math.tanh %72 : vector<8x128xf32>
    %74 = arith.mulf %73, %55 : vector<8x128xf32>
    %75 = arith.addf %74, %56 : vector<8x128xf32>
    %76 = arith.truncf %75 : vector<8x128xf32> to vector<8x128xbf16>
    %c2 = arith.constant 2 : index
    %c0_53 = arith.constant 0 : index
    %c0_54 = arith.constant 0 : index
    %77 = vector.load %arg7[%c2, %c0_53, %c0_54] : memref<3x128x256xbf16, #tpu.memory_space<vmem>>, vector<1x128x256xbf16>
    %78 = vector.shape_cast %77 : vector<1x128x256xbf16> to vector<128x256xbf16>
    %cst_55 = arith.constant dense<0.000000e+00> : vector<8x256xf32>
    %79 = tpu.matmul %76, %78, %cst_55 {dimension_numbers = #tpu.dot_dimension_numbers<[1], [0], [0], [1], [0, 0, 1, 1], [], []>} : vector<8x128xbf16>, vector<128x256xbf16>, vector<8x256xf32> -> vector<8x256xf32>
    %c2_56 = arith.constant 2 : index
    %c0_57 = arith.constant 0 : index
    %c0_58 = arith.constant 0 : index
    %80 = vector.load %arg8[%c2_56, %c0_57, %c0_58] : memref<3x1x256xf32, #tpu.memory_space<vmem>>, vector<1x1x256xf32>
    %81 = vector.shape_cast %80 : vector<1x1x256xf32> to vector<1x256xf32>
    %82 = vector.broadcast %81 : vector<1x256xf32> to vector<8x256xf32>
    %83 = arith.addf %79, %82 : vector<8x256xf32>
    %84 = vector.extract_strided_slice %83 {offsets = [0, 0], sizes = [8, 128], strides = [1, 1]} : vector<8x256xf32> to vector<8x128xf32>
    %85 = math.tanh %84 : vector<8x128xf32>
    %86 = vector.extract_strided_slice %83 {offsets = [0, 128], sizes = [8, 128], strides = [1, 1]} : vector<8x256xf32> to vector<8x128xf32>
    %c2_59 = arith.constant 2 : index
    %c0_60 = arith.constant 0 : index
    %c0_61 = arith.constant 0 : index
    %87 = vector.load %arg9[%c2_59, %c0_60, %c0_61] : memref<3x128x128xbf16, #tpu.memory_space<vmem>>, vector<1x128x128xbf16>
    %88 = vector.shape_cast %87 : vector<1x128x128xbf16> to vector<128x128xbf16>
    %cst_62 = arith.constant dense<0.000000e+00> : vector<8x128xf32>
    %89 = tpu.matmul %7, %88, %cst_62 {dimension_numbers = #tpu.dot_dimension_numbers<[1], [0], [0], [1], [0, 0, 1, 1], [], []>} : vector<8x128xbf16>, vector<128x128xbf16>, vector<8x128xf32> -> vector<8x128xf32>
    %c2_63 = arith.constant 2 : index
    %c0_64 = arith.constant 0 : index
    %c0_65 = arith.constant 0 : index
    %90 = vector.load %arg10[%c2_63, %c0_64, %c0_65] : memref<3x1x128xf32, #tpu.memory_space<vmem>>, vector<1x1x128xf32>
    %91 = vector.shape_cast %90 : vector<1x1x128xf32> to vector<1x128xf32>
    %92 = vector.broadcast %91 : vector<1x128xf32> to vector<8x128xf32>
    %93 = arith.addf %89, %92 : vector<8x128xf32>
    %94 = math.tanh %93 : vector<8x128xf32>
    %95 = arith.truncf %94 : vector<8x128xf32> to vector<8x128xbf16>
    %c2_66 = arith.constant 2 : index
    %c0_67 = arith.constant 0 : index
    %c0_68 = arith.constant 0 : index
    %96 = vector.load %arg11[%c2_66, %c0_67, %c0_68] : memref<3x128x128xbf16, #tpu.memory_space<vmem>>, vector<1x128x128xbf16>
    %97 = vector.shape_cast %96 : vector<1x128x128xbf16> to vector<128x128xbf16>
    %cst_69 = arith.constant dense<0.000000e+00> : vector<8x128xf32>
    %98 = tpu.matmul %95, %97, %cst_69 {dimension_numbers = #tpu.dot_dimension_numbers<[1], [0], [0], [1], [0, 0, 1, 1], [], []>} : vector<8x128xbf16>, vector<128x128xbf16>, vector<8x128xf32> -> vector<8x128xf32>
    %c2_70 = arith.constant 2 : index
    %c0_71 = arith.constant 0 : index
    %c0_72 = arith.constant 0 : index
    %99 = vector.load %arg12[%c2_70, %c0_71, %c0_72] : memref<3x1x128xf32, #tpu.memory_space<vmem>>, vector<1x1x128xf32>
    %100 = vector.shape_cast %99 : vector<1x1x128xf32> to vector<1x128xf32>
    %101 = vector.broadcast %100 : vector<1x128xf32> to vector<8x128xf32>
    %102 = arith.addf %98, %101 : vector<8x128xf32>
    %103 = math.tanh %102 : vector<8x128xf32>
    %104 = arith.mulf %103, %85 : vector<8x128xf32>
    %105 = arith.addf %104, %86 : vector<8x128xf32>
    %106 = arith.truncf %105 : vector<8x128xf32> to vector<8x128xbf16>
    %c0_73 = arith.constant 0 : index
    %c0_74 = arith.constant 0 : index
    %107 = vector.load %arg13[%c0_73, %c0_74] : memref<128x128xbf16, #tpu.memory_space<vmem>>, vector<128x128xbf16>
    %cst_75 = arith.constant dense<0.000000e+00> : vector<8x128xf32>
    %108 = tpu.matmul %106, %107, %cst_75 {dimension_numbers = #tpu.dot_dimension_numbers<[1], [0], [0], [1], [0, 0, 1, 1], [], []>} : vector<8x128xbf16>, vector<128x128xbf16>, vector<8x128xf32> -> vector<8x128xf32>
    %c0_76 = arith.constant 0 : index
    %c0_77 = arith.constant 0 : index
    %109 = vector.load %arg14[%c0_76, %c0_77] : memref<1x128xf32, #tpu.memory_space<vmem>>, vector<1x128xf32>
    %110 = vector.broadcast %109 : vector<1x128xf32> to vector<8x128xf32>
    %111 = arith.addf %108, %110 : vector<8x128xf32>
    %c0_78 = arith.constant 0 : index
    %c0_79 = arith.constant 0 : index
    %112 = vector.load %arg15[%c0_78, %c0_79] : memref<8x128xf32, #tpu.memory_space<vmem>>, vector<8x128xf32>
    tpu.vector_store %arg15[%c0_78, %c0_79], %111 {strides = array<i32>} : memref<8x128xf32, #tpu.memory_space<vmem>>, vector<8x128xf32>,
    return
  }
  func.func @transform_0(%arg0: i32) -> (i32, i32) {
    %c0_i32 = arith.constant 0 : i32
    %c0_i32_0 = arith.constant 0 : i32
    %c0_i32_1 = arith.constant 0 : i32
    return %c0_i32, %c0_i32_0 : i32, i32
  }
  func.func @transform_1(%arg0: i32) -> (i32, i32) {
    %c0_i32 = arith.constant 0 : i32
    %c0_i32_0 = arith.constant 0 : i32
    %c0_i32_1 = arith.constant 0 : i32
    return %c0_i32, %c0_i32_0 : i32, i32
  }
  func.func @transform_2(%arg0: i32) -> (i32, i32) {
    %c0_i32 = arith.constant 0 : i32
    %c0_i32_0 = arith.constant 0 : i32
    %c0_i32_1 = arith.constant 0 : i32
    return %c0_i32, %c0_i32_0 : i32, i32
  }
  func.func @transform_3(%arg0: i32) -> (i32, i32) {
    %c0_i32 = arith.constant 0 : i32
    %c0_i32_0 = arith.constant 0 : i32
    %c0_i32_1 = arith.constant 0 : i32
    return %c0_i32, %c0_i32_0 : i32, i32
  }
  func.func @transform_4(%arg0: i32) -> (i32, i32) {
    %c0_i32 = arith.constant 0 : i32
    %c0_i32_0 = arith.constant 0 : i32
    %c0_i32_1 = arith.constant 0 : i32
    return %c0_i32, %c0_i32_0 : i32, i32
  }
  func.func @transform_5(%arg0: i32) -> (i32, i32) {
    %c0_i32 = arith.constant 0 : i32
    %c0_i32_0 = arith.constant 0 : i32
    %c0_i32_1 = arith.constant 0 : i32
    return %c0_i32, %c0_i32_0 : i32, i32
  }
  func.func @transform_6(%arg0: i32) -> (i32, i32, i32) {
    %c0_i32 = arith.constant 0 : i32
    %c0_i32_0 = arith.constant 0 : i32
    %c0_i32_1 = arith.constant 0 : i32
    %c0_i32_2 = arith.constant 0 : i32
    return %c0_i32, %c0_i32_0, %c0_i32_1 : i32, i32, i32
  }
  func.func @transform_7(%arg0: i32) -> (i32, i32, i32) {
    %c0_i32 = arith.constant 0 : i32
    %c0_i32_0 = arith.constant 0 : i32
    %c0_i32_1 = arith.constant 0 : i32
    %c0_i32_2 = arith.constant 0 : i32
    return %c0_i32, %c0_i32_0, %c0_i32_1 : i32, i32, i32
  }
  func.func @transform_8(%arg0: i32) -> (i32, i32, i32) {
    %c0_i32 = arith.constant 0 : i32
    %c0_i32_0 = arith.constant 0 : i32
    %c0_i32_1 = arith.constant 0 : i32
    %c0_i32_2 = arith.constant 0 : i32
    return %c0_i32, %c0_i32_0, %c0_i32_1 : i32, i32, i32
  }
  func.func @transform_9(%arg0: i32) -> (i32, i32, i32) {
    %c0_i32 = arith.constant 0 : i32
    %c0_i32_0 = arith.constant 0 : i32
    %c0_i32_1 = arith.constant 0 : i32
    %c0_i32_2 = arith.constant 0 : i32
    return %c0_i32, %c0_i32_0, %c0_i32_1 : i32, i32, i32
  }
  func.func @transform_10(%arg0: i32) -> (i32, i32, i32) {
    %c0_i32 = arith.constant 0 : i32
    %c0_i32_0 = arith.constant 0 : i32
    %c0_i32_1 = arith.constant 0 : i32
    %c0_i32_2 = arith.constant 0 : i32
    return %c0_i32, %c0_i32_0, %c0_i32_1 : i32, i32, i32
  }
  func.func @transform_11(%arg0: i32) -> (i32, i32, i32) {
    %c0_i32 = arith.constant 0 : i32
    %c0_i32_0 = arith.constant 0 : i32
    %c0_i32_1 = arith.constant 0 : i32
    %c0_i32_2 = arith.constant 0 : i32
    return %c0_i32, %c0_i32_0, %c0_i32_1 : i32, i32, i32
  }
  func.func @transform_12(%arg0: i32) -> (i32, i32) {
    %c0_i32 = arith.constant 0 : i32
    %c0_i32_0 = arith.constant 0 : i32
    %c0_i32_1 = arith.constant 0 : i32
    return %c0_i32, %c0_i32_0 : i32, i32
  }
  func.func @transform_13(%arg0: i32) -> (i32, i32) {
    %c0_i32 = arith.constant 0 : i32
    %c0_i32_0 = arith.constant 0 : i32
    %c0_i32_1 = arith.constant 0 : i32
    return %c0_i32, %c0_i32_0 : i32, i32
  }
  func.func @transform_14(%arg0: i32) -> (i32, i32) {
    %c0_i32 = arith.constant 0 : i32
    %c0_i32_0 = arith.constant 0 : i32
    %c0_i32_1 = arith.constant 0 : i32
    return %c0_i32, %c0_i32_0 : i32, i32
  }
}

</mosaic_0001>

<llo_original>
// kernel: _lambda_.1
$region0: #{_lambda_.1}
  #allocation0 [shape = 'u32[]', space=smem, size = 0x4, offset = 0x4, fixed_abs, tag = 'smem constant byte address 0x4 - core index']
  #allocation1 [shape = 'u32[144,128]{1,0:T(1,128)}', space=vmem, size = 0x12000, scoped, tag = 'internal scratch']
  %s0 = inlined_call_operand.vmem [shape: f32[8,128], index: 0, kind: input, shape index: {}]
  %s1 = inlined_call_operand.vmem [shape: f32[8,128], index: 1, kind: input, shape index: {}]
  %s2 = inlined_call_operand.vmem [shape: bf16[128,128], index: 2, kind: input, shape index: {}]
  %s3 = inlined_call_operand.vmem [shape: f32[1,128], index: 3, kind: input, shape index: {}]
  %s4 = inlined_call_operand.vmem [shape: bf16[128,128], index: 4, kind: input, shape index: {}]
  %s5 = inlined_call_operand.vmem [shape: f32[1,128], index: 5, kind: input, shape index: {}]
  %s6 = inlined_call_operand.vmem [shape: bf16[3,128,256], index: 6, kind: input, shape index: {}]
  %s7 = inlined_call_operand.vmem [shape: f32[3,1,256], index: 7, kind: input, shape index: {}]
  %s8 = inlined_call_operand.vmem [shape: bf16[3,128,128], index: 8, kind: input, shape index: {}]
  %s9 = inlined_call_operand.vmem [shape: f32[3,1,128], index: 9, kind: input, shape index: {}]
  %s10 = inlined_call_operand.vmem [shape: bf16[3,128,128], index: 10, kind: input, shape index: {}]
  %s11 = inlined_call_operand.vmem [shape: f32[3,1,128], index: 11, kind: input, shape index: {}]
  %s12 = inlined_call_operand.vmem [shape: bf16[128,128], index: 12, kind: input, shape index: {}]
  %s13 = inlined_call_operand.vmem [shape: f32[1,128], index: 13, kind: input, shape index: {}]
  %s14 = inlined_call_operand.vmem [shape: f32[8,128], index: 14, kind: output, shape index: {}]
  %s15 = sld [smem:[#allocation0]]
  $region66: #{_lambda_.1} parent=0
    _
  %s17 = ssub.s32 1, %s15
  %s18 = scalar_select 0, %s17, %s15
  // Predicated region
  $region2: #{_lambda_.1} parent=0 // pred_check
    _
  $region3: #{_lambda_.1} parent=0 // pred_check_branch
    %20 = sbr.rel (0) target = $region5
  $region4: #{_lambda_.1} parent=0 // pred_region
    _
  $region5: #{_lambda_.1} parent=0 // pred_fallthru
    _
  // Predicated region
  $region6: #{_lambda_.1} parent=0 // pred_check
    _
  $region7: #{_lambda_.1} parent=0 // pred_check_branch
    %22 = sbr.rel (0) target = $region9
  $region8: #{_lambda_.1} parent=0 // pred_region
    _
  $region9: #{_lambda_.1} parent=0 // pred_fallthru
    _
  // Predicated region
  $region10: #{_lambda_.1} parent=0 // pred_check
    _
  $region11: #{_lambda_.1} parent=0 // pred_check_branch
    %24 = sbr.rel (0) target = $region13
  $region12: #{_lambda_.1} parent=0 // pred_region
    _
  $region13: #{_lambda_.1} parent=0 // pred_fallthru
    _
  // Predicated region
  $region14: #{_lambda_.1} parent=0 // pred_check
    _
  $region15: #{_lambda_.1} parent=0 // pred_check_branch
    %26 = sbr.rel (0) target = $region17
  $region16: #{_lambda_.1} parent=0 // pred_region
    _
  $region17: #{_lambda_.1} parent=0 // pred_fallthru
    _
  // Predicated region
  $region18: #{_lambda_.1} parent=0 // pred_check
    _
  $region19: #{_lambda_.1} parent=0 // pred_check_branch
    %28 = sbr.rel (0) target = $region21
  $region20: #{_lambda_.1} parent=0 // pred_region
    _
  $region21: #{_lambda_.1} parent=0 // pred_fallthru
    _
  // Predicated region
  $region22: #{_lambda_.1} parent=0 // pred_check
    _
  $region23: #{_lambda_.1} parent=0 // pred_check_branch
    %30 = sbr.rel (0) target = $region25
  $region24: #{_lambda_.1} parent=0 // pred_region
    _
  $region25: #{_lambda_.1} parent=0 // pred_fallthru
    _
  // Predicated region
  $region26: #{_lambda_.1} parent=0 // pred_check
    _
  $region27: #{_lambda_.1} parent=0 // pred_check_branch
    %32 = sbr.rel (0) target = $region29
  $region28: #{_lambda_.1} parent=0 // pred_region
    _
  $region29: #{_lambda_.1} parent=0 // pred_fallthru
    _
  // Predicated region
  $region30: #{_lambda_.1} parent=0 // pred_check
    _
  $region31: #{_lambda_.1} parent=0 // pred_check_branch
    %34 = sbr.rel (0) target = $region33
  $region32: #{_lambda_.1} parent=0 // pred_region
    _
  $region33: #{_lambda_.1} parent=0 // pred_fallthru
    _
  // Predicated region
  $region34: #{_lambda_.1} parent=0 // pred_check
    _
  $region35: #{_lambda_.1} parent=0 // pred_check_branch
    %36 = sbr.rel (0) target = $region37
  $region36: #{_lambda_.1} parent=0 // pred_region
    _
  $region37: #{_lambda_.1} parent=0 // pred_fallthru
    _
  // Predicated region
  $region38: #{_lambda_.1} parent=0 // pred_check
    _
  $region39: #{_lambda_.1} parent=0 // pred_check_branch
    %38 = sbr.rel (0) target = $region41
  $region40: #{_lambda_.1} parent=0 // pred_region
    _
  $region41: #{_lambda_.1} parent=0 // pred_fallthru
    _
  // Predicated region
  $region42: #{_lambda_.1} parent=0 // pred_check
    _
  $region43: #{_lambda_.1} parent=0 // pred_check_branch
    %40 = sbr.rel (0) target = $region45
  $region44: #{_lambda_.1} parent=0 // pred_region
    _
  $region45: #{_lambda_.1} parent=0 // pred_fallthru
    _
  // Predicated region
  $region46: #{_lambda_.1} parent=0 // pred_check
    _
  $region47: #{_lambda_.1} parent=0 // pred_check_branch
    %42 = sbr.rel (0) target = $region49
  $region48: #{_lambda_.1} parent=0 // pred_region
    _
  $region49: #{_lambda_.1} parent=0 // pred_fallthru
    _
  // Predicated region
  $region50: #{_lambda_.1} parent=0 // pred_check
    _
  $region51: #{_lambda_.1} parent=0 // pred_check_branch
    %44 = sbr.rel (0) target = $region53
  $region52: #{_lambda_.1} parent=0 // pred_region
    _
  $region53: #{_lambda_.1} parent=0 // pred_fallthru
    _
  // Predicated region
  $region54: #{_lambda_.1} parent=0 // pred_check
    _
  $region55: #{_lambda_.1} parent=0 // pred_check_branch
    %46 = sbr.rel (0) target = $region57
  $region56: #{_lambda_.1} parent=0 // pred_region
    _
  $region57: #{_lambda_.1} parent=0 // pred_fallthru
    _
  %v48 = vld [vmem:[%s0] sm:$0xff]
  %v49 = vpack.c.bf16 %v48, %v48
  %v50 = vld [vmem:[%s2] sm:$0xf]
  %v51 = vld [vmem:[%s2 + $0x4] sm:$0xf]
  %v52 = vld [vmem:[%s2 + $0x8] sm:$0xf]
  %v53 = vld [vmem:[%s2 + $0xc] sm:$0xf]
  %v54 = vld [vmem:[%s2 + $0x10] sm:$0xf]
  %v55 = vld [vmem:[%s2 + $0x14] sm:$0xf]
  %v56 = vld [vmem:[%s2 + $0x18] sm:$0xf]
  %v57 = vld [vmem:[%s2 + $0x1c] sm:$0xf]
  %v58 = vld [vmem:[%s2 + $0x20] sm:$0xf]
  %v59 = vld [vmem:[%s2 + $0x24] sm:$0xf]
  %v60 = vld [vmem:[%s2 + $0x28] sm:$0xf]
  %v61 = vld [vmem:[%s2 + $0x2c] sm:$0xf]
  %v62 = vld [vmem:[%s2 + $0x30] sm:$0xf]
  %v63 = vld [vmem:[%s2 + $0x34] sm:$0xf]
  %v64 = vld [vmem:[%s2 + $0x38] sm:$0xf]
  %v65 = vld [vmem:[%s2 + $0x3c] sm:$0xf]
  %v66 = vld [vmem:[%s3] sm:$0x1]
  %v68 = vlaneseq
  %v69 = vshrl.u32 %v68, 7
  %v70 = vsub.s32 0, %v69
  %v71 = vrot.slane %v66, %v70
  %v89 = vunpack.c.l.b16 %v50
  %v90 = vunpack.c.l.b16 %v51
  %v91 = vunpack.c.l.b16 %v52
  %v92 = vunpack.c.l.b16 %v53
  %v93 = vunpack.c.l.b16 %v54
  %v94 = vunpack.c.l.b16 %v55
  %v95 = vunpack.c.l.b16 %v56
  %v96 = vunpack.c.l.b16 %v57
  %v97 = vunpack.c.l.b16 %v58
  %v98 = vunpack.c.l.b16 %v59
  %v99 = vunpack.c.l.b16 %v60
  %v100 = vunpack.c.l.b16 %v61
  %v101 = vunpack.c.l.b16 %v62
  %v102 = vunpack.c.l.b16 %v63
  %v103 = vunpack.c.l.b16 %v64
  %v104 = vunpack.c.l.b16 %v65
  %v105 = vpack.c.b16 %v90, %v89
  %v106 = vpack.c.b16 %v92, %v91
  %v107 = vpack.c.b16 %v94, %v93
  %v108 = vpack.c.b16 %v96, %v95
  %v109 = vpack.c.b16 %v98, %v97
  %v110 = vpack.c.b16 %v100, %v99
  %v111 = vpack.c.b16 %v102, %v101
  %v112 = vpack.c.b16 %v104, %v103
  %121 = vmatprep.subr.bf16.mxu0 0
  %122 = vmatpush1.bf16.msra.mxu0 %v105
  %123 = vmatprep.subr.bf16.mxu0 0
  %124 = vmatpush1.bf16.msra.mxu0 %v106
  %125 = vmatprep.subr.bf16.mxu0 0
  %126 = vmatpush1.bf16.msra.mxu0 %v107
  %127 = vmatprep.subr.bf16.mxu0 0
  %128 = vmatpush1.bf16.msra.mxu0 %v108
  %129 = vmatprep.subr.bf16.mxu0 0
  %130 = vmatpush1.bf16.msra.mxu0 %v109
  %131 = vmatprep.subr.bf16.mxu0 0
  %132 = vmatpush1.bf16.msra.mxu0 %v110
  %133 = vmatprep.subr.bf16.mxu0 0
  %134 = vmatpush1.bf16.msra.mxu0 %v111
  %135 = vmatprep.subr.bf16.mxu0 0
  %136 = vmatpush1.bf16.msra.mxu0 %v112
  %137 = vmatprep.subr.bf16.mxu0 0
  %138 = vmatpush1.bf16.msra.mxu0 0
  %139 = vmatprep.subr.bf16.mxu0 0
  %140 = vmatpush1.bf16.msra.mxu0 0
  %141 = vmatprep.subr.bf16.mxu0 0
  %142 = vmatpush1.bf16.msra.mxu0 0
  %143 = vmatprep.subr.bf16.mxu0 0
  %144 = vmatpush1.bf16.msra.mxu0 0
  %145 = vmatprep.subr.bf16.mxu0 0
  %146 = vmatpush1.bf16.msra.mxu0 0
  %147 = vmatprep.subr.bf16.mxu0 0
  %148 = vmatpush1.bf16.msra.mxu0 0
  %149 = vmatprep.subr.bf16.mxu0 0
  %150 = vmatpush1.bf16.msra.mxu0 0
  %151 = vmatprep.subr.bf16.mxu0 0
  %152 = vmatpush1.bf16.msra.mxu0 0
  %153 = vmatprep.mubr.bf16.mxu0 0
  %154 = vmatmul.mubr.bf16.gmra.mrb[0].mxu0 %v49
  %v155 = vpop.f32.mrb[0].mxu0
  %v156 = vadd.f32 %v71, %v155
  %v157 = vpop.f32.mrb[0].mxu0
  %v158 = vpop.f32.mrb[0].mxu0
  %v159 = vpop.f32.mrb[0].mxu0
  %160 = vdwg.mxu0
  %v161 = vpack.c.bf16 %v156, %v156
  %v162 = vld [vmem:[%s1] sm:$0xff]
  %v163 = vpack.c.bf16 %v162, %v162
  %v164 = vld [vmem:[%s4] sm:$0xf]
  %v165 = vld [vmem:[%s4 + $0x4] sm:$0xf]
  %v166 = vld [vmem:[%s4 + $0x8] sm:$0xf]
  %v167 = vld [vmem:[%s4 + $0xc] sm:$0xf]
  %v168 = vld [vmem:[%s4 + $0x10] sm:$0xf]
  %v169 = vld [vmem:[%s4 + $0x14] sm:$0xf]
  %v170 = vld [vmem:[%s4 + $0x18] sm:$0xf]
  %v171 = vld [vmem:[%s4 + $0x1c] sm:$0xf]
  %v172 = vld [vmem:[%s4 + $0x20] sm:$0xf]
  %v173 = vld [vmem:[%s4 + $0x24] sm:$0xf]
  %v174 = vld [vmem:[%s4 + $0x28] sm:$0xf]
  %v175 = vld [vmem:[%s4 + $0x2c] sm:$0xf]
  %v176 = vld [vmem:[%s4 + $0x30] sm:$0xf]
  %v177 = vld [vmem:[%s4 + $0x34] sm:$0xf]
  %v178 = vld [vmem:[%s4 + $0x38] sm:$0xf]
  %v179 = vld [vmem:[%s4 + $0x3c] sm:$0xf]
  %v180 = vld [vmem:[%s5] sm:$0x1]
  %v182 = vlaneseq
  %v183 = vshrl.u32 %v182, 7
  %v184 = vsub.s32 0, %v183
  %v185 = vrot.slane %v180, %v184
  %v203 = vunpack.c.l.b16 %v164
  %v204 = vunpack.c.l.b16 %v165
  %v205 = vunpack.c.l.b16 %v166
  %v206 = vunpack.c.l.b16 %v167
  %v207 = vunpack.c.l.b16 %v168
  %v208 = vunpack.c.l.b16 %v169
  %v209 = vunpack.c.l.b16 %v170
  %v210 = vunpack.c.l.b16 %v171
  %v211 = vunpack.c.l.b16 %v172
  %v212 = vunpack.c.l.b16 %v173
  %v213 = vunpack.c.l.b16 %v174
  %v214 = vunpack.c.l.b16 %v175
  %v215 = vunpack.c.l.b16 %v176
  %v216 = vunpack.c.l.b16 %v177
  %v217 = vunpack.c.l.b16 %v178
  %v218 = vunpack.c.l.b16 %v179
  %v219 = vpack.c.b16 %v204, %v203
  %v220 = vpack.c.b16 %v206, %v205
  %v221 = vpack.c.b16 %v208, %v207
  %v222 = vpack.c.b16 %v210, %v209
  %v223 = vpack.c.b16 %v212, %v211
  %v224 = vpack.c.b16 %v214, %v213
  %v225 = vpack.c.b16 %v216, %v215
  %v226 = vpack.c.b16 %v218, %v217
  %235 = vmatprep.subr.bf16.mxu0 0
  %236 = vmatpush1.bf16.msra.mxu0 %v219
  %237 = vmatprep.subr.bf16.mxu0 0
  %238 = vmatpush1.bf16.msra.mxu0 %v220
  %239 = vmatprep.subr.bf16.mxu0 0
  %240 = vmatpush1.bf16.msra.mxu0 %v221
  %241 = vmatprep.subr.bf16.mxu0 0
  %242 = vmatpush1.bf16.msra.mxu0 %v222
  %243 = vmatprep.subr.bf16.mxu0 0
  %244 = vmatpush1.bf16.msra.mxu0 %v223
  %245 = vmatprep.subr.bf16.mxu0 0
  %246 = vmatpush1.bf16.msra.mxu0 %v224
  %247 = vmatprep.subr.bf16.mxu0 0
  %248 = vmatpush1.bf16.msra.mxu0 %v225
  %249 = vmatprep.subr.bf16.mxu0 0
  %250 = vmatpush1.bf16.msra.mxu0 %v226
  %251 = vmatprep.subr.bf16.mxu0 0
  %252 = vmatpush1.bf16.msra.mxu0 0
  %253 = vmatprep.subr.bf16.mxu0 0
  %254 = vmatpush1.bf16.msra.mxu0 0
  %255 = vmatprep.subr.bf16.mxu0 0
  %256 = vmatpush1.bf16.msra.mxu0 0
  %257 = vmatprep.subr.bf16.mxu0 0
  %258 = vmatpush1.bf16.msra.mxu0 0
  %259 = vmatprep.subr.bf16.mxu0 0
  %260 = vmatpush1.bf16.msra.mxu0 0
  %261 = vmatprep.subr.bf16.mxu0 0
  %262 = vmatpush1.bf16.msra.mxu0 0
  %263 = vmatprep.subr.bf16.mxu0 0
  %264 = vmatpush1.bf16.msra.mxu0 0
  %265 = vmatprep.subr.bf16.mxu0 0
  %266 = vmatpush1.bf16.msra.mxu0 0
  %267 = vmatprep.mubr.bf16.mxu0 0
  %268 = vmatmul.mubr.bf16.gmra.mrb[0].mxu0 %v163
  %v269 = vpop.f32.mrb[0].mxu0
  %v270 = vadd.f32 %v185, %v269
  %v271 = vpop.f32.mrb[0].mxu0
  %v272 = vpop.f32.mrb[0].mxu0
  %v273 = vpop.f32.mrb[0].mxu0
  %274 = vdwg.mxu0
  %v275 = vtanh.pop %v270
  %v276 = vpack.c.bf16 %v275, %v275
  %v277 = vld [vmem:[%s6] sm:$0xff]
  %v278 = vld [vmem:[%s6 + $0x8] sm:$0xff]
  %v279 = vld [vmem:[%s6 + $0x10] sm:$0xff]
  %v280 = vld [vmem:[%s6 + $0x18] sm:$0xff]
  %v281 = vld [vmem:[%s6 + $0x20] sm:$0xff]
  %v282 = vld [vmem:[%s6 + $0x28] sm:$0xff]
  %v283 = vld [vmem:[%s6 + $0x30] sm:$0xff]
  %v284 = vld [vmem:[%s6 + $0x38] sm:$0xff]
  %v285 = vld [vmem:[%s6 + $0x40] sm:$0xff]
  %v286 = vld [vmem:[%s6 + $0x48] sm:$0xff]
  %v287 = vld [vmem:[%s6 + $0x50] sm:$0xff]
  %v288 = vld [vmem:[%s6 + $0x58] sm:$0xff]
  %v289 = vld [vmem:[%s6 + $0x60] sm:$0xff]
  %v290 = vld [vmem:[%s6 + $0x68] sm:$0xff]
  %v291 = vld [vmem:[%s6 + $0x70] sm:$0xff]
  %v292 = vld [vmem:[%s6 + $0x78] sm:$0xff]
  %v293 = vld [vmem:[%s7] sm:$0x3]
  %v295 = vlaneseq
  %v296 = vshrl.u32 %v295, 7
  %v297 = vsub.s32 0, %v296
  %v298 = vrot.slane %v293, %v297
  %v299 = vlaneseq
  %v300 = vshrl.u32 %v299, 7
  %v301 = vsub.s32 1, %v300
  %v302 = vrot.slane %v293, %v301
  %v321 = vunpack.c.l.b16 %v277
  %v322 = vunpack.c.h.b16 %v277
  %v323 = vunpack.c.l.b16 %v278
  %v324 = vunpack.c.h.b16 %v278
  %v325 = vunpack.c.l.b16 %v279
  %v326 = vunpack.c.h.b16 %v279
  %v327 = vunpack.c.l.b16 %v280
  %v328 = vunpack.c.h.b16 %v280
  %v329 = vunpack.c.l.b16 %v281
  %v330 = vunpack.c.h.b16 %v281
  %v331 = vunpack.c.l.b16 %v282
  %v332 = vunpack.c.h.b16 %v282
  %v333 = vunpack.c.l.b16 %v283
  %v334 = vunpack.c.h.b16 %v283
  %v335 = vunpack.c.l.b16 %v284
  %v336 = vunpack.c.h.b16 %v284
  %v337 = vunpack.c.l.b16 %v285
  %v338 = vunpack.c.h.b16 %v285
  %v339 = vunpack.c.l.b16 %v286
  %v340 = vunpack.c.h.b16 %v286
  %v341 = vunpack.c.l.b16 %v287
  %v342 = vunpack.c.h.b16 %v287
  %v343 = vunpack.c.l.b16 %v288
  %v344 = vunpack.c.h.b16 %v288
  %v345 = vunpack.c.l.b16 %v289
  %v346 = vunpack.c.h.b16 %v289
  %v347 = vunpack.c.l.b16 %v290
  %v348 = vunpack.c.h.b16 %v290
  %v349 = vunpack.c.l.b16 %v291
  %v350 = vunpack.c.h.b16 %v291
  %v351 = vunpack.c.l.b16 %v292
  %v352 = vunpack.c.h.b16 %v292
  %v353 = vpack.c.b16 %v323, %v321
  %v354 = vpack.c.b16 %v324, %v322
  %v355 = vpack.c.b16 %v327, %v325
  %v356 = vpack.c.b16 %v328, %v326
  %v357 = vpack.c.b16 %v331, %v329
  %v358 = vpack.c.b16 %v332, %v330
  %v359 = vpack.c.b16 %v335, %v333
  %v360 = vpack.c.b16 %v336, %v334
  %v361 = vpack.c.b16 %v339, %v337
  %v362 = vpack.c.b16 %v340, %v338
  %v363 = vpack.c.b16 %v343, %v341
  %v364 = vpack.c.b16 %v344, %v342
  %v365 = vpack.c.b16 %v347, %v345
  %v366 = vpack.c.b16 %v348, %v346
  %v367 = vpack.c.b16 %v351, %v349
  %v368 = vpack.c.b16 %v352, %v350
  %385 = vmatprep.subr.bf16.mxu0 %v354
  %386 = vmatpush1.bf16.msra.mxu0 %v353
  %387 = vmatprep.subr.bf16.mxu0 %v356
  %388 = vmatpush1.bf16.msra.mxu0 %v355
  %389 = vmatprep.subr.bf16.mxu0 %v358
  %390 = vmatpush1.bf16.msra.mxu0 %v357
  %391 = vmatprep.subr.bf16.mxu0 %v360
  %392 = vmatpush1.bf16.msra.mxu0 %v359
  %393 = vmatprep.subr.bf16.mxu0 %v362
  %394 = vmatpush1.bf16.msra.mxu0 %v361
  %395 = vmatprep.subr.bf16.mxu0 %v364
  %396 = vmatpush1.bf16.msra.mxu0 %v363
  %397 = vmatprep.subr.bf16.mxu0 %v366
  %398 = vmatpush1.bf16.msra.mxu0 %v365
  %399 = vmatprep.subr.bf16.mxu0 %v368
  %400 = vmatpush1.bf16.msra.mxu0 %v367
  %401 = vmatprep.subr.bf16.mxu0 0
  %402 = vmatpush1.bf16.msra.mxu0 0
  %403 = vmatprep.subr.bf16.mxu0 0
  %404 = vmatpush1.bf16.msra.mxu0 0
  %405 = vmatprep.subr.bf16.mxu0 0
  %406 = vmatpush1.bf16.msra.mxu0 0
  %407 = vmatprep.subr.bf16.mxu0 0
  %408 = vmatpush1.bf16.msra.mxu0 0
  %409 = vmatprep.subr.bf16.mxu0 0
  %410 = vmatpush1.bf16.msra.mxu0 0
  %411 = vmatprep.subr.bf16.mxu0 0
  %412 = vmatpush1.bf16.msra.mxu0 0
  %413 = vmatprep.subr.bf16.mxu0 0
  %414 = vmatpush1.bf16.msra.mxu0 0
  %415 = vmatprep.subr.bf16.mxu0 0
  %416 = vmatpush1.bf16.msra.mxu0 0
  %417 = vmatprep.mubr.bf16.mxu0 0
  %418 = vmatmul.mubr.bf16.gmra.mrb[0].mxu0 %v276
  %v419 = vpop.f32.mrb[0].mxu0
  %v420 = vadd.f32 %v298, %v419
  %v421 = vpop.f32.mrb[0].mxu0
  %v422 = vadd.f32 %v302, %v421
  %v423 = vpop.f32.mrb[0].mxu0
  %v424 = vpop.f32.mrb[0].mxu0
  %425 = vdwg.mxu0
  %v426 = vtanh.pop %v420
  %v427 = vld [vmem:[%s8] sm:$0xf]
  %v428 = vld [vmem:[%s8 + $0x4] sm:$0xf]
  %v429 = vld [vmem:[%s8 + $0x8] sm:$0xf]
  %v430 = vld [vmem:[%s8 + $0xc] sm:$0xf]
  %v431 = vld [vmem:[%s8 + $0x10] sm:$0xf]
  %v432 = vld [vmem:[%s8 + $0x14] sm:$0xf]
  %v433 = vld [vmem:[%s8 + $0x18] sm:$0xf]
  %v434 = vld [vmem:[%s8 + $0x1c] sm:$0xf]
  %v435 = vld [vmem:[%s8 + $0x20] sm:$0xf]
  %v436 = vld [vmem:[%s8 + $0x24] sm:$0xf]
  %v437 = vld [vmem:[%s8 + $0x28] sm:$0xf]
  %v438 = vld [vmem:[%s8 + $0x2c] sm:$0xf]
  %v439 = vld [vmem:[%s8 + $0x30] sm:$0xf]
  %v440 = vld [vmem:[%s8 + $0x34] sm:$0xf]
  %v441 = vld [vmem:[%s8 + $0x38] sm:$0xf]
  %v442 = vld [vmem:[%s8 + $0x3c] sm:$0xf]
  %v443 = vld [vmem:[%s9] sm:$0x1]
  %v445 = vlaneseq
  %v446 = vshrl.u32 %v445, 7
  %v447 = vsub.s32 0, %v446
  %v448 = vrot.slane %v443, %v447
  %v466 = vunpack.c.l.b16 %v427
  %v467 = vunpack.c.l.b16 %v428
  %v468 = vunpack.c.l.b16 %v429
  %v469 = vunpack.c.l.b16 %v430
  %v470 = vunpack.c.l.b16 %v431
  %v471 = vunpack.c.l.b16 %v432
  %v472 = vunpack.c.l.b16 %v433
  %v473 = vunpack.c.l.b16 %v434
  %v474 = vunpack.c.l.b16 %v435
  %v475 = vunpack.c.l.b16 %v436
  %v476 = vunpack.c.l.b16 %v437
  %v477 = vunpack.c.l.b16 %v438
  %v478 = vunpack.c.l.b16 %v439
  %v479 = vunpack.c.l.b16 %v440
  %v480 = vunpack.c.l.b16 %v441
  %v481 = vunpack.c.l.b16 %v442
  %v482 = vpack.c.b16 %v467, %v466
  %v483 = vpack.c.b16 %v469, %v468
  %v484 = vpack.c.b16 %v471, %v470
  %v485 = vpack.c.b16 %v473, %v472
  %v486 = vpack.c.b16 %v475, %v474
  %v487 = vpack.c.b16 %v477, %v476
  %v488 = vpack.c.b16 %v479, %v478
  %v489 = vpack.c.b16 %v481, %v480
  %498 = vmatprep.subr.bf16.mxu0 0
  %499 = vmatpush1.bf16.msra.mxu0 %v482
  %500 = vmatprep.subr.bf16.mxu0 0
  %501 = vmatpush1.bf16.msra.mxu0 %v483
  %502 = vmatprep.subr.bf16.mxu0 0
  %503 = vmatpush1.bf16.msra.mxu0 %v484
  %504 = vmatprep.subr.bf16.mxu0 0
  %505 = vmatpush1.bf16.msra.mxu0 %v485
  %506 = vmatprep.subr.bf16.mxu0 0
  %507 = vmatpush1.bf16.msra.mxu0 %v486
  %508 = vmatprep.subr.bf16.mxu0 0
  %509 = vmatpush1.bf16.msra.mxu0 %v487
  %510 = vmatprep.subr.bf16.mxu0 0
  %511 = vmatpush1.bf16.msra.mxu0 %v488
  %512 = vmatprep.subr.bf16.mxu0 0
  %513 = vmatpush1.bf16.msra.mxu0 %v489
  %514 = vmatprep.subr.bf16.mxu0 0
  %515 = vmatpush1.bf16.msra.mxu0 0
  %516 = vmatprep.subr.bf16.mxu0 0
  %517 = vmatpush1.bf16.msra.mxu0 0
  %518 = vmatprep.subr.bf16.mxu0 0
  %519 = vmatpush1.bf16.msra.mxu0 0
  %520 = vmatprep.subr.bf16.mxu0 0
  %521 = vmatpush1.bf16.msra.mxu0 0
  %522 = vmatprep.subr.bf16.mxu0 0
  %523 = vmatpush1.bf16.msra.mxu0 0
  %524 = vmatprep.subr.bf16.mxu0 0
  %525 = vmatpush1.bf16.msra.mxu0 0
  %526 = vmatprep.subr.bf16.mxu0 0
  %527 = vmatpush1.bf16.msra.mxu0 0
  %528 = vmatprep.subr.bf16.mxu0 0
  %529 = vmatpush1.bf16.msra.mxu0 0
  %530 = vmatprep.mubr.bf16.mxu0 0
  %531 = vmatmul.mubr.bf16.gmra.mrb[0].mxu0 %v161
  %v532 = vpop.f32.mrb[0].mxu0
  %v533 = vadd.f32 %v448, %v532
  %v534 = vpop.f32.mrb[0].mxu0
  %v535 = vpop.f32.mrb[0].mxu0
  %v536 = vpop.f32.mrb[0].mxu0
  %537 = vdwg.mxu0
  %v538 = vtanh.pop %v533
  %v539 = vpack.c.bf16 %v538, %v538
  %v540 = vld [vmem:[%s10] sm:$0xf]
  %v541 = vld [vmem:[%s10 + $0x4] sm:$0xf]
  %v542 = vld [vmem:[%s10 + $0x8] sm:$0xf]
  %v543 = vld [vmem:[%s10 + $0xc] sm:$0xf]
  %v544 = vld [vmem:[%s10 + $0x10] sm:$0xf]
  %v545 = vld [vmem:[%s10 + $0x14] sm:$0xf]
  %v546 = vld [vmem:[%s10 + $0x18] sm:$0xf]
  %v547 = vld [vmem:[%s10 + $0x1c] sm:$0xf]
  %v548 = vld [vmem:[%s10 + $0x20] sm:$0xf]
  %v549 = vld [vmem:[%s10 + $0x24] sm:$0xf]
  %v550 = vld [vmem:[%s10 + $0x28] sm:$0xf]
  %v551 = vld [vmem:[%s10 + $0x2c] sm:$0xf]
  %v552 = vld [vmem:[%s10 + $0x30] sm:$0xf]
  %v553 = vld [vmem:[%s10 + $0x34] sm:$0xf]
  %v554 = vld [vmem:[%s10 + $0x38] sm:$0xf]
  %v555 = vld [vmem:[%s10 + $0x3c] sm:$0xf]
  %v556 = vld [vmem:[%s11] sm:$0x1]
  %v558 = vlaneseq
  %v559 = vshrl.u32 %v558, 7
  %v560 = vsub.s32 0, %v559
  %v561 = vrot.slane %v556, %v560
  %v579 = vunpack.c.l.b16 %v540
  %v580 = vunpack.c.l.b16 %v541
  %v581 = vunpack.c.l.b16 %v542
  %v582 = vunpack.c.l.b16 %v543
  %v583 = vunpack.c.l.b16 %v544
  %v584 = vunpack.c.l.b16 %v545
  %v585 = vunpack.c.l.b16 %v546
  %v586 = vunpack.c.l.b16 %v547
  %v587 = vunpack.c.l.b16 %v548
  %v588 = vunpack.c.l.b16 %v549
  %v589 = vunpack.c.l.b16 %v550
  %v590 = vunpack.c.l.b16 %v551
  %v591 = vunpack.c.l.b16 %v552
  %v592 = vunpack.c.l.b16 %v553
  %v593 = vunpack.c.l.b16 %v554
  %v594 = vunpack.c.l.b16 %v555
  %v595 = vpack.c.b16 %v580, %v579
  %v596 = vpack.c.b16 %v582, %v581
  %v597 = vpack.c.b16 %v584, %v583
  %v598 = vpack.c.b16 %v586, %v585
  %v599 = vpack.c.b16 %v588, %v587
  %v600 = vpack.c.b16 %v590, %v589
  %v601 = vpack.c.b16 %v592, %v591
  %v602 = vpack.c.b16 %v594, %v593
  %611 = vmatprep.subr.bf16.mxu0 0
  %612 = vmatpush1.bf16.msra.mxu0 %v595
  %613 = vmatprep.subr.bf16.mxu0 0
  %614 = vmatpush1.bf16.msra.mxu0 %v596
  %615 = vmatprep.subr.bf16.mxu0 0
  %616 = vmatpush1.bf16.msra.mxu0 %v597
  %617 = vmatprep.subr.bf16.mxu0 0
  %618 = vmatpush1.bf16.msra.mxu0 %v598
  %619 = vmatprep.subr.bf16.mxu0 0
  %620 = vmatpush1.bf16.msra.mxu0 %v599
  %621 = vmatprep.subr.bf16.mxu0 0
  %622 = vmatpush1.bf16.msra.mxu0 %v600
  %623 = vmatprep.subr.bf16.mxu0 0
  %624 = vmatpush1.bf16.msra.mxu0 %v601
  %625 = vmatprep.subr.bf16.mxu0 0
  %626 = vmatpush1.bf16.msra.mxu0 %v602
  %627 = vmatprep.subr.bf16.mxu0 0
  %628 = vmatpush1.bf16.msra.mxu0 0
  %629 = vmatprep.subr.bf16.mxu0 0
  %630 = vmatpush1.bf16.msra.mxu0 0
  %631 = vmatprep.subr.bf16.mxu0 0
  %632 = vmatpush1.bf16.msra.mxu0 0
  %633 = vmatprep.subr.bf16.mxu0 0
  %634 = vmatpush1.bf16.msra.mxu0 0
  %635 = vmatprep.subr.bf16.mxu0 0
  %636 = vmatpush1.bf16.msra.mxu0 0
  %637 = vmatprep.subr.bf16.mxu0 0
  %638 = vmatpush1.bf16.msra.mxu0 0
  %639 = vmatprep.subr.bf16.mxu0 0
  %640 = vmatpush1.bf16.msra.mxu0 0
  %641 = vmatprep.subr.bf16.mxu0 0
  %642 = vmatpush1.bf16.msra.mxu0 0
  %643 = vmatprep.mubr.bf16.mxu0 0
  %644 = vmatmul.mubr.bf16.gmra.mrb[0].mxu0 %v539
  %v645 = vpop.f32.mrb[0].mxu0
  %v646 = vadd.f32 %v561, %v645
  %v647 = vpop.f32.mrb[0].mxu0
  %v648 = vpop.f32.mrb[0].mxu0
  %v649 = vpop.f32.mrb[0].mxu0
  %650 = vdwg.mxu0
  %v651 = vtanh.pop %v646
  %v652 = vmul.f32 %v651, %v426
  %v653 = vadd.f32 %v652, %v422
  %v654 = vpack.c.bf16 %v653, %v653
  %s655 = scalar_lea.vmem %s6, 128
  %v656 = vld [vmem:[%s655] sm:$0xff]
  %v657 = vld [vmem:[%s655 + $0x8] sm:$0xff]
  %v658 = vld [vmem:[%s655 + $0x10] sm:$0xff]
  %v659 = vld [vmem:[%s655 + $0x18] sm:$0xff]
  %v660 = vld [vmem:[%s655 + $0x20] sm:$0xff]
  %v661 = vld [vmem:[%s655 + $0x28] sm:$0xff]
  %v662 = vld [vmem:[%s655 + $0x30] sm:$0xff]
  %v663 = vld [vmem:[%s655 + $0x38] sm:$0xff]
  %v664 = vld [vmem:[%s655 + $0x40] sm:$0xff]
  %v665 = vld [vmem:[%s655 + $0x48] sm:$0xff]
  %v666 = vld [vmem:[%s655 + $0x50] sm:$0xff]
  %v667 = vld [vmem:[%s655 + $0x58] sm:$0xff]
  %v668 = vld [vmem:[%s655 + $0x60] sm:$0xff]
  %v669 = vld [vmem:[%s655 + $0x68] sm:$0xff]
  %v670 = vld [vmem:[%s655 + $0x70] sm:$0xff]
  %v671 = vld [vmem:[%s655 + $0x78] sm:$0xff]
  %s672 = scalar_lea.vmem %s7, 2
  %v673 = vld [vmem:[%s672] sm:$0x3]
  %v675 = vlaneseq
  %v676 = vshrl.u32 %v675, 7
  %v677 = vsub.s32 0, %v676
  %v678 = vrot.slane %v673, %v677
  %v679 = vlaneseq
  %v680 = vshrl.u32 %v679, 7
  %v681 = vsub.s32 1, %v680
  %v682 = vrot.slane %v673, %v681
  %v701 = vunpack.c.l.b16 %v656
  %v702 = vunpack.c.h.b16 %v656
  %v703 = vunpack.c.l.b16 %v657
  %v704 = vunpack.c.h.b16 %v657
  %v705 = vunpack.c.l.b16 %v658
  %v706 = vunpack.c.h.b16 %v658
  %v707 = vunpack.c.l.b16 %v659
  %v708 = vunpack.c.h.b16 %v659
  %v709 = vunpack.c.l.b16 %v660
  %v710 = vunpack.c.h.b16 %v660
  %v711 = vunpack.c.l.b16 %v661
  %v712 = vunpack.c.h.b16 %v661
  %v713 = vunpack.c.l.b16 %v662
  %v714 = vunpack.c.h.b16 %v662
  %v715 = vunpack.c.l.b16 %v663
  %v716 = vunpack.c.h.b16 %v663
  %v717 = vunpack.c.l.b16 %v664
  %v718 = vunpack.c.h.b16 %v664
  %v719 = vunpack.c.l.b16 %v665
  %v720 = vunpack.c.h.b16 %v665
  %v721 = vunpack.c.l.b16 %v666
  %v722 = vunpack.c.h.b16 %v666
  %v723 = vunpack.c.l.b16 %v667
  %v724 = vunpack.c.h.b16 %v667
  %v725 = vunpack.c.l.b16 %v668
  %v726 = vunpack.c.h.b16 %v668
  %v727 = vunpack.c.l.b16 %v669
  %v728 = vunpack.c.h.b16 %v669
  %v729 = vunpack.c.l.b16 %v670
  %v730 = vunpack.c.h.b16 %v670
  %v731 = vunpack.c.l.b16 %v671
  %v732 = vunpack.c.h.b16 %v671
  %v733 = vpack.c.b16 %v703, %v701
  %v734 = vpack.c.b16 %v704, %v702
  %v735 = vpack.c.b16 %v707, %v705
  %v736 = vpack.c.b16 %v708, %v706
  %v737 = vpack.c.b16 %v711, %v709
  %v738 = vpack.c.b16 %v712, %v710
  %v739 = vpack.c.b16 %v715, %v713
  %v740 = vpack.c.b16 %v716, %v714
  %v741 = vpack.c.b16 %v719, %v717
  %v742 = vpack.c.b16 %v720, %v718
  %v743 = vpack.c.b16 %v723, %v721
  %v744 = vpack.c.b16 %v724, %v722
  %v745 = vpack.c.b16 %v727, %v725
  %v746 = vpack.c.b16 %v728, %v726
  %v747 = vpack.c.b16 %v731, %v729
  %v748 = vpack.c.b16 %v732, %v730
  %765 = vmatprep.subr.bf16.mxu0 %v734
  %766 = vmatpush1.bf16.msra.mxu0 %v733
  %767 = vmatprep.subr.bf16.mxu0 %v736
  %768 = vmatpush1.bf16.msra.mxu0 %v735
  %769 = vmatprep.subr.bf16.mxu0 %v738
  %770 = vmatpush1.bf16.msra.mxu0 %v737
  %771 = vmatprep.subr.bf16.mxu0 %v740
  %772 = vmatpush1.bf16.msra.mxu0 %v739
  %773 = vmatprep.subr.bf16.mxu0 %v742
  %774 = vmatpush1.bf16.msra.mxu0 %v741
  %775 = vmatprep.subr.bf16.mxu0 %v744
  %776 = vmatpush1.bf16.msra.mxu0 %v743
  %777 = vmatprep.subr.bf16.mxu0 %v746
  %778 = vmatpush1.bf16.msra.mxu0 %v745
  %779 = vmatprep.subr.bf16.mxu0 %v748
  %780 = vmatpush1.bf16.msra.mxu0 %v747
  %781 = vmatprep.subr.bf16.mxu0 0
  %782 = vmatpush1.bf16.msra.mxu0 0
  %783 = vmatprep.subr.bf16.mxu0 0
  %784 = vmatpush1.bf16.msra.mxu0 0
  %785 = vmatprep.subr.bf16.mxu0 0
  %786 = vmatpush1.bf16.msra.mxu0 0
  %787 = vmatprep.subr.bf16.mxu0 0
  %788 = vmatpush1.bf16.msra.mxu0 0
  %789 = vmatprep.subr.bf16.mxu0 0
  %790 = vmatpush1.bf16.msra.mxu0 0
  %791 = vmatprep.subr.bf16.mxu0 0
  %792 = vmatpush1.bf16.msra.mxu0 0
  %793 = vmatprep.subr.bf16.mxu0 0
  %794 = vmatpush1.bf16.msra.mxu0 0
  %795 = vmatprep.subr.bf16.mxu0 0
  %796 = vmatpush1.bf16.msra.mxu0 0
  %797 = vmatprep.mubr.bf16.mxu0 0
  %798 = vmatmul.mubr.bf16.gmra.mrb[0].mxu0 %v654
  %v799 = vpop.f32.mrb[0].mxu0
  %v800 = vadd.f32 %v678, %v799
  %v801 = vpop.f32.mrb[0].mxu0
  %v802 = vadd.f32 %v682, %v801
  %v803 = vpop.f32.mrb[0].mxu0
  %v804 = vpop.f32.mrb[0].mxu0
  %805 = vdwg.mxu0
  %v806 = vtanh.pop %v800
  %s807 = scalar_lea.vmem %s8, 64
  %v808 = vld [vmem:[%s807] sm:$0xf]
  %v809 = vld [vmem:[%s807 + $0x4] sm:$0xf]
  %v810 = vld [vmem:[%s807 + $0x8] sm:$0xf]
  %v811 = vld [vmem:[%s807 + $0xc] sm:$0xf]
  %v812 = vld [vmem:[%s807 + $0x10] sm:$0xf]
  %v813 = vld [vmem:[%s807 + $0x14] sm:$0xf]
  %v814 = vld [vmem:[%s807 + $0x18] sm:$0xf]
  %v815 = vld [vmem:[%s807 + $0x1c] sm:$0xf]
  %v816 = vld [vmem:[%s807 + $0x20] sm:$0xf]
  %v817 = vld [vmem:[%s807 + $0x24] sm:$0xf]
  %v818 = vld [vmem:[%s807 + $0x28] sm:$0xf]
  %v819 = vld [vmem:[%s807 + $0x2c] sm:$0xf]
  %v820 = vld [vmem:[%s807 + $0x30] sm:$0xf]
  %v821 = vld [vmem:[%s807 + $0x34] sm:$0xf]
  %v822 = vld [vmem:[%s807 + $0x38] sm:$0xf]
  %v823 = vld [vmem:[%s807 + $0x3c] sm:$0xf]
  %s824 = scalar_lea.vmem %s9, 1
  %v825 = vld [vmem:[%s824] sm:$0x1]
  %v827 = vlaneseq
  %v828 = vshrl.u32 %v827, 7
  %v829 = vsub.s32 0, %v828
  %v830 = vrot.slane %v825, %v829
  %v848 = vunpack.c.l.b16 %v808
  %v849 = vunpack.c.l.b16 %v809
  %v850 = vunpack.c.l.b16 %v810
  %v851 = vunpack.c.l.b16 %v811
  %v852 = vunpack.c.l.b16 %v812
  %v853 = vunpack.c.l.b16 %v813
  %v854 = vunpack.c.l.b16 %v814
  %v855 = vunpack.c.l.b16 %v815
  %v856 = vunpack.c.l.b16 %v816
  %v857 = vunpack.c.l.b16 %v817
  %v858 = vunpack.c.l.b16 %v818
  %v859 = vunpack.c.l.b16 %v819
  %v860 = vunpack.c.l.b16 %v820
  %v861 = vunpack.c.l.b16 %v821
  %v862 = vunpack.c.l.b16 %v822
  %v863 = vunpack.c.l.b16 %v823
  %v864 = vpack.c.b16 %v849, %v848
  %v865 = vpack.c.b16 %v851, %v850
  %v866 = vpack.c.b16 %v853, %v852
  %v867 = vpack.c.b16 %v855, %v854
  %v868 = vpack.c.b16 %v857, %v856
  %v869 = vpack.c.b16 %v859, %v858
  %v870 = vpack.c.b16 %v861, %v860
  %v871 = vpack.c.b16 %v863, %v862
  %880 = vmatprep.subr.bf16.mxu0 0
  %881 = vmatpush1.bf16.msra.mxu0 %v864
  %882 = vmatprep.subr.bf16.mxu0 0
  %883 = vmatpush1.bf16.msra.mxu0 %v865
  %884 = vmatprep.subr.bf16.mxu0 0
  %885 = vmatpush1.bf16.msra.mxu0 %v866
  %886 = vmatprep.subr.bf16.mxu0 0
  %887 = vmatpush1.bf16.msra.mxu0 %v867
  %888 = vmatprep.subr.bf16.mxu0 0
  %889 = vmatpush1.bf16.msra.mxu0 %v868
  %890 = vmatprep.subr.bf16.mxu0 0
  %891 = vmatpush1.bf16.msra.mxu0 %v869
  %892 = vmatprep.subr.bf16.mxu0 0
  %893 = vmatpush1.bf16.msra.mxu0 %v870
  %894 = vmatprep.subr.bf16.mxu0 0
  %895 = vmatpush1.bf16.msra.mxu0 %v871
  %896 = vmatprep.subr.bf16.mxu0 0
  %897 = vmatpush1.bf16.msra.mxu0 0
  %898 = vmatprep.subr.bf16.mxu0 0
  %899 = vmatpush1.bf16.msra.mxu0 0
  %900 = vmatprep.subr.bf16.mxu0 0
  %901 = vmatpush1.bf16.msra.mxu0 0
  %902 = vmatprep.subr.bf16.mxu0 0
  %903 = vmatpush1.bf16.msra.mxu0 0
  %904 = vmatprep.subr.bf16.mxu0 0
  %905 = vmatpush1.bf16.msra.mxu0 0
  %906 = vmatprep.subr.bf16.mxu0 0
  %907 = vmatpush1.bf16.msra.mxu0 0
  %908 = vmatprep.subr.bf16.mxu0 0
  %909 = vmatpush1.bf16.msra.mxu0 0
  %910 = vmatprep.subr.bf16.mxu0 0
  %911 = vmatpush1.bf16.msra.mxu0 0
  %912 = vmatprep.mubr.bf16.mxu0 0
  %913 = vmatmul.mubr.bf16.gmra.mrb[0].mxu0 %v161
  %v914 = vpop.f32.mrb[0].mxu0
  %v915 = vadd.f32 %v830, %v914
  %v916 = vpop.f32.mrb[0].mxu0
  %v917 = vpop.f32.mrb[0].mxu0
  %v918 = vpop.f32.mrb[0].mxu0
  %919 = vdwg.mxu0
  %v920 = vtanh.pop %v915
  %v921 = vpack.c.bf16 %v920, %v920
  %s922 = scalar_lea.vmem %s10, 64
  %v923 = vld [vmem:[%s922] sm:$0xf]
  %v924 = vld [vmem:[%s922 + $0x4] sm:$0xf]
  %v925 = vld [vmem:[%s922 + $0x8] sm:$0xf]
  %v926 = vld [vmem:[%s922 + $0xc] sm:$0xf]
  %v927 = vld [vmem:[%s922 + $0x10] sm:$0xf]
  %v928 = vld [vmem:[%s922 + $0x14] sm:$0xf]
  %v929 = vld [vmem:[%s922 + $0x18] sm:$0xf]
  %v930 = vld [vmem:[%s922 + $0x1c] sm:$0xf]
  %v931 = vld [vmem:[%s922 + $0x20] sm:$0xf]
  %v932 = vld [vmem:[%s922 + $0x24] sm:$0xf]
  %v933 = vld [vmem:[%s922 + $0x28] sm:$0xf]
  %v934 = vld [vmem:[%s922 + $0x2c] sm:$0xf]
  %v935 = vld [vmem:[%s922 + $0x30] sm:$0xf]
  %v936 = vld [vmem:[%s922 + $0x34] sm:$0xf]
  %v937 = vld [vmem:[%s922 + $0x38] sm:$0xf]
  %v938 = vld [vmem:[%s922 + $0x3c] sm:$0xf]
  %s939 = scalar_lea.vmem %s11, 1
  %v940 = vld [vmem:[%s939] sm:$0x1]
  %v942 = vlaneseq
  %v943 = vshrl.u32 %v942, 7
  %v944 = vsub.s32 0, %v943
  %v945 = vrot.slane %v940, %v944
  %v963 = vunpack.c.l.b16 %v923
  %v964 = vunpack.c.l.b16 %v924
  %v965 = vunpack.c.l.b16 %v925
  %v966 = vunpack.c.l.b16 %v926
  %v967 = vunpack.c.l.b16 %v927
  %v968 = vunpack.c.l.b16 %v928
  %v969 = vunpack.c.l.b16 %v929
  %v970 = vunpack.c.l.b16 %v930
  %v971 = vunpack.c.l.b16 %v931
  %v972 = vunpack.c.l.b16 %v932
  %v973 = vunpack.c.l.b16 %v933
  %v974 = vunpack.c.l.b16 %v934
  %v975 = vunpack.c.l.b16 %v935
  %v976 = vunpack.c.l.b16 %v936
  %v977 = vunpack.c.l.b16 %v937
  %v978 = vunpack.c.l.b16 %v938
  %v979 = vpack.c.b16 %v964, %v963
  %v980 = vpack.c.b16 %v966, %v965
  %v981 = vpack.c.b16 %v968, %v967
  %v982 = vpack.c.b16 %v970, %v969
  %v983 = vpack.c.b16 %v972, %v971
  %v984 = vpack.c.b16 %v974, %v973
  %v985 = vpack.c.b16 %v976, %v975
  %v986 = vpack.c.b16 %v978, %v977
  %995 = vmatprep.subr.bf16.mxu0 0
  %996 = vmatpush1.bf16.msra.mxu0 %v979
  %997 = vmatprep.subr.bf16.mxu0 0
  %998 = vmatpush1.bf16.msra.mxu0 %v980
  %999 = vmatprep.subr.bf16.mxu0 0
  %1000 = vmatpush1.bf16.msra.mxu0 %v981
  %1001 = vmatprep.subr.bf16.mxu0 0
  %1002 = vmatpush1.bf16.msra.mxu0 %v982
  %1003 = vmatprep.subr.bf16.mxu0 0
  %1004 = vmatpush1.bf16.msra.mxu0 %v983
  %1005 = vmatprep.subr.bf16.mxu0 0
  %1006 = vmatpush1.bf16.msra.mxu0 %v984
  %1007 = vmatprep.subr.bf16.mxu0 0
  %1008 = vmatpush1.bf16.msra.mxu0 %v985
  %1009 = vmatprep.subr.bf16.mxu0 0
  %1010 = vmatpush1.bf16.msra.mxu0 %v986
  %1011 = vmatprep.subr.bf16.mxu0 0
  %1012 = vmatpush1.bf16.msra.mxu0 0
  %1013 = vmatprep.subr.bf16.mxu0 0
  %1014 = vmatpush1.bf16.msra.mxu0 0
  %1015 = vmatprep.subr.bf16.mxu0 0
  %1016 = vmatpush1.bf16.msra.mxu0 0
  %1017 = vmatprep.subr.bf16.mxu0 0
  %1018 = vmatpush1.bf16.msra.mxu0 0
  %1019 = vmatprep.subr.bf16.mxu0 0
  %1020 = vmatpush1.bf16.msra.mxu0 0
  %1021 = vmatprep.subr.bf16.mxu0 0
  %1022 = vmatpush1.bf16.msra.mxu0 0
  %1023 = vmatprep.subr.bf16.mxu0 0
  %1024 = vmatpush1.bf16.msra.mxu0 0
  %1025 = vmatprep.subr.bf16.mxu0 0
  %1026 = vmatpush1.bf16.msra.mxu0 0
  %1027 = vmatprep.mubr.bf16.mxu0 0
  %1028 = vmatmul.mubr.bf16.gmra.mrb[0].mxu0 %v921
  %v1029 = vpop.f32.mrb[0].mxu0
  %v1030 = vadd.f32 %v945, %v1029
  %v1031 = vpop.f32.mrb[0].mxu0
  %v1032 = vpop.f32.mrb[0].mxu0
  %v1033 = vpop.f32.mrb[0].mxu0
  %1034 = vdwg.mxu0
  %v1035 = vtanh.pop %v1030
  %v1036 = vmul.f32 %v1035, %v806
  %v1037 = vadd.f32 %v1036, %v802
  %v1038 = vpack.c.bf16 %v1037, %v1037
  %s1039 = scalar_lea.vmem %s6, 256
  %v1040 = vld [vmem:[%s1039] sm:$0xff]
  %v1041 = vld [vmem:[%s1039 + $0x8] sm:$0xff]
  %v1042 = vld [vmem:[%s1039 + $0x10] sm:$0xff]
  %v1043 = vld [vmem:[%s1039 + $0x18] sm:$0xff]
  %v1044 = vld [vmem:[%s1039 + $0x20] sm:$0xff]
  %v1045 = vld [vmem:[%s1039 + $0x28] sm:$0xff]
  %v1046 = vld [vmem:[%s1039 + $0x30] sm:$0xff]
  %v1047 = vld [vmem:[%s1039 + $0x38] sm:$0xff]
  %v1048 = vld [vmem:[%s1039 + $0x40] sm:$0xff]
  %v1049 = vld [vmem:[%s1039 + $0x48] sm:$0xff]
  %v1050 = vld [vmem:[%s1039 + $0x50] sm:$0xff]
  %v1051 = vld [vmem:[%s1039 + $0x58] sm:$0xff]
  %v1052 = vld [vmem:[%s1039 + $0x60] sm:$0xff]
  %v1053 = vld [vmem:[%s1039 + $0x68] sm:$0xff]
  %v1054 = vld [vmem:[%s1039 + $0x70] sm:$0xff]
  %v1055 = vld [vmem:[%s1039 + $0x78] sm:$0xff]
  %s1056 = scalar_lea.vmem %s7, 4
  %v1057 = vld [vmem:[%s1056] sm:$0x3]
  %v1059 = vlaneseq
  %v1060 = vshrl.u32 %v1059, 7
  %v1061 = vsub.s32 0, %v1060
  %v1062 = vrot.slane %v1057, %v1061
  %v1063 = vlaneseq
  %v1064 = vshrl.u32 %v1063, 7
  %v1065 = vsub.s32 1, %v1064
  %v1066 = vrot.slane %v1057, %v1065
  %v1085 = vunpack.c.l.b16 %v1040
  %v1086 = vunpack.c.h.b16 %v1040
  %v1087 = vunpack.c.l.b16 %v1041
  %v1088 = vunpack.c.h.b16 %v1041
  %v1089 = vunpack.c.l.b16 %v1042
  %v1090 = vunpack.c.h.b16 %v1042
  %v1091 = vunpack.c.l.b16 %v1043
  %v1092 = vunpack.c.h.b16 %v1043
  %v1093 = vunpack.c.l.b16 %v1044
  %v1094 = vunpack.c.h.b16 %v1044
  %v1095 = vunpack.c.l.b16 %v1045
  %v1096 = vunpack.c.h.b16 %v1045
  %v1097 = vunpack.c.l.b16 %v1046
  %v1098 = vunpack.c.h.b16 %v1046
  %v1099 = vunpack.c.l.b16 %v1047
  %v1100 = vunpack.c.h.b16 %v1047
  %v1101 = vunpack.c.l.b16 %v1048
  %v1102 = vunpack.c.h.b16 %v1048
  %v1103 = vunpack.c.l.b16 %v1049
  %v1104 = vunpack.c.h.b16 %v1049
  %v1105 = vunpack.c.l.b16 %v1050
  %v1106 = vunpack.c.h.b16 %v1050
  %v1107 = vunpack.c.l.b16 %v1051
  %v1108 = vunpack.c.h.b16 %v1051
  %v1109 = vunpack.c.l.b16 %v1052
  %v1110 = vunpack.c.h.b16 %v1052
  %v1111 = vunpack.c.l.b16 %v1053
  %v1112 = vunpack.c.h.b16 %v1053
  %v1113 = vunpack.c.l.b16 %v1054
  %v1114 = vunpack.c.h.b16 %v1054
  %v1115 = vunpack.c.l.b16 %v1055
  %v1116 = vunpack.c.h.b16 %v1055
  %v1117 = vpack.c.b16 %v1087, %v1085
  %v1118 = vpack.c.b16 %v1088, %v1086
  %v1119 = vpack.c.b16 %v1091, %v1089
  %v1120 = vpack.c.b16 %v1092, %v1090
  %v1121 = vpack.c.b16 %v1095, %v1093
  %v1122 = vpack.c.b16 %v1096, %v1094
  %v1123 = vpack.c.b16 %v1099, %v1097
  %v1124 = vpack.c.b16 %v1100, %v1098
  %v1125 = vpack.c.b16 %v1103, %v1101
  %v1126 = vpack.c.b16 %v1104, %v1102
  %v1127 = vpack.c.b16 %v1107, %v1105
  %v1128 = vpack.c.b16 %v1108, %v1106
  %v1129 = vpack.c.b16 %v1111, %v1109
  %v1130 = vpack.c.b16 %v1112, %v1110
  %v1131 = vpack.c.b16 %v1115, %v1113
  %v1132 = vpack.c.b16 %v1116, %v1114
  %1149 = vmatprep.subr.bf16.mxu0 %v1118
  %1150 = vmatpush1.bf16.msra.mxu0 %v1117
  %1151 = vmatprep.subr.bf16.mxu0 %v1120
  %1152 = vmatpush1.bf16.msra.mxu0 %v1119
  %1153 = vmatprep.subr.bf16.mxu0 %v1122
  %1154 = vmatpush1.bf16.msra.mxu0 %v1121
  %1155 = vmatprep.subr.bf16.mxu0 %v1124
  %1156 = vmatpush1.bf16.msra.mxu0 %v1123
  %1157 = vmatprep.subr.bf16.mxu0 %v1126
  %1158 = vmatpush1.bf16.msra.mxu0 %v1125
  %1159 = vmatprep.subr.bf16.mxu0 %v1128
  %1160 = vmatpush1.bf16.msra.mxu0 %v1127
  %1161 = vmatprep.subr.bf16.mxu0 %v1130
  %1162 = vmatpush1.bf16.msra.mxu0 %v1129
  %1163 = vmatprep.subr.bf16.mxu0 %v1132
  %1164 = vmatpush1.bf16.msra.mxu0 %v1131
  %1165 = vmatprep.subr.bf16.mxu0 0
  %1166 = vmatpush1.bf16.msra.mxu0 0
  %1167 = vmatprep.subr.bf16.mxu0 0
  %1168 = vmatpush1.bf16.msra.mxu0 0
  %1169 = vmatprep.subr.bf16.mxu0 0
  %1170 = vmatpush1.bf16.msra.mxu0 0
  %1171 = vmatprep.subr.bf16.mxu0 0
  %1172 = vmatpush1.bf16.msra.mxu0 0
  %1173 = vmatprep.subr.bf16.mxu0 0
  %1174 = vmatpush1.bf16.msra.mxu0 0
  %1175 = vmatprep.subr.bf16.mxu0 0
  %1176 = vmatpush1.bf16.msra.mxu0 0
  %1177 = vmatprep.subr.bf16.mxu0 0
  %1178 = vmatpush1.bf16.msra.mxu0 0
  %1179 = vmatprep.subr.bf16.mxu0 0
  %1180 = vmatpush1.bf16.msra.mxu0 0
  %1181 = vmatprep.mubr.bf16.mxu0 0
  %1182 = vmatmul.mubr.bf16.gmra.mrb[0].mxu0 %v1038
  %v1183 = vpop.f32.mrb[0].mxu0
  %v1184 = vadd.f32 %v1062, %v1183
  %v1185 = vpop.f32.mrb[0].mxu0
  %v1186 = vadd.f32 %v1066, %v1185
  %v1187 = vpop.f32.mrb[0].mxu0
  %v1188 = vpop.f32.mrb[0].mxu0
  %1189 = vdwg.mxu0
  %v1190 = vtanh.pop %v1184
  %s1191 = scalar_lea.vmem %s8, 128
  %v1192 = vld [vmem:[%s1191] sm:$0xf]
  %v1193 = vld [vmem:[%s1191 + $0x4] sm:$0xf]
  %v1194 = vld [vmem:[%s1191 + $0x8] sm:$0xf]
  %v1195 = vld [vmem:[%s1191 + $0xc] sm:$0xf]
  %v1196 = vld [vmem:[%s1191 + $0x10] sm:$0xf]
  %v1197 = vld [vmem:[%s1191 + $0x14] sm:$0xf]
  %v1198 = vld [vmem:[%s1191 + $0x18] sm:$0xf]
  %v1199 = vld [vmem:[%s1191 + $0x1c] sm:$0xf]
  %v1200 = vld [vmem:[%s1191 + $0x20] sm:$0xf]
  %v1201 = vld [vmem:[%s1191 + $0x24] sm:$0xf]
  %v1202 = vld [vmem:[%s1191 + $0x28] sm:$0xf]
  %v1203 = vld [vmem:[%s1191 + $0x2c] sm:$0xf]
  %v1204 = vld [vmem:[%s1191 + $0x30] sm:$0xf]
  %v1205 = vld [vmem:[%s1191 + $0x34] sm:$0xf]
  %v1206 = vld [vmem:[%s1191 + $0x38] sm:$0xf]
  %v1207 = vld [vmem:[%s1191 + $0x3c] sm:$0xf]
  %s1208 = scalar_lea.vmem %s9, 2
  %v1209 = vld [vmem:[%s1208] sm:$0x1]
  %v1211 = vlaneseq
  %v1212 = vshrl.u32 %v1211, 7
  %v1213 = vsub.s32 0, %v1212
  %v1214 = vrot.slane %v1209, %v1213
  %v1232 = vunpack.c.l.b16 %v1192
  %v1233 = vunpack.c.l.b16 %v1193
  %v1234 = vunpack.c.l.b16 %v1194
  %v1235 = vunpack.c.l.b16 %v1195
  %v1236 = vunpack.c.l.b16 %v1196
  %v1237 = vunpack.c.l.b16 %v1197
  %v1238 = vunpack.c.l.b16 %v1198
  %v1239 = vunpack.c.l.b16 %v1199
  %v1240 = vunpack.c.l.b16 %v1200
  %v1241 = vunpack.c.l.b16 %v1201
  %v1242 = vunpack.c.l.b16 %v1202
  %v1243 = vunpack.c.l.b16 %v1203
  %v1244 = vunpack.c.l.b16 %v1204
  %v1245 = vunpack.c.l.b16 %v1205
  %v1246 = vunpack.c.l.b16 %v1206
  %v1247 = vunpack.c.l.b16 %v1207
  %v1248 = vpack.c.b16 %v1233, %v1232
  %v1249 = vpack.c.b16 %v1235, %v1234
  %v1250 = vpack.c.b16 %v1237, %v1236
  %v1251 = vpack.c.b16 %v1239, %v1238
  %v1252 = vpack.c.b16 %v1241, %v1240
  %v1253 = vpack.c.b16 %v1243, %v1242
  %v1254 = vpack.c.b16 %v1245, %v1244
  %v1255 = vpack.c.b16 %v1247, %v1246
  %1264 = vmatprep.subr.bf16.mxu0 0
  %1265 = vmatpush1.bf16.msra.mxu0 %v1248
  %1266 = vmatprep.subr.bf16.mxu0 0
  %1267 = vmatpush1.bf16.msra.mxu0 %v1249
  %1268 = vmatprep.subr.bf16.mxu0 0
  %1269 = vmatpush1.bf16.msra.mxu0 %v1250
  %1270 = vmatprep.subr.bf16.mxu0 0
  %1271 = vmatpush1.bf16.msra.mxu0 %v1251
  %1272 = vmatprep.subr.bf16.mxu0 0
  %1273 = vmatpush1.bf16.msra.mxu0 %v1252
  %1274 = vmatprep.subr.bf16.mxu0 0
  %1275 = vmatpush1.bf16.msra.mxu0 %v1253
  %1276 = vmatprep.subr.bf16.mxu0 0
  %1277 = vmatpush1.bf16.msra.mxu0 %v1254
  %1278 = vmatprep.subr.bf16.mxu0 0
  %1279 = vmatpush1.bf16.msra.mxu0 %v1255
  %1280 = vmatprep.subr.bf16.mxu0 0
  %1281 = vmatpush1.bf16.msra.mxu0 0
  %1282 = vmatprep.subr.bf16.mxu0 0
  %1283 = vmatpush1.bf16.msra.mxu0 0
  %1284 = vmatprep.subr.bf16.mxu0 0
  %1285 = vmatpush1.bf16.msra.mxu0 0
  %1286 = vmatprep.subr.bf16.mxu0 0
  %1287 = vmatpush1.bf16.msra.mxu0 0
  %1288 = vmatprep.subr.bf16.mxu0 0
  %1289 = vmatpush1.bf16.msra.mxu0 0
  %1290 = vmatprep.subr.bf16.mxu0 0
  %1291 = vmatpush1.bf16.msra.mxu0 0
  %1292 = vmatprep.subr.bf16.mxu0 0
  %1293 = vmatpush1.bf16.msra.mxu0 0
  %1294 = vmatprep.subr.bf16.mxu0 0
  %1295 = vmatpush1.bf16.msra.mxu0 0
  %1296 = vmatprep.mubr.bf16.mxu0 0
  %1297 = vmatmul.mubr.bf16.gmra.mrb[0].mxu0 %v161
  %v1298 = vpop.f32.mrb[0].mxu0
  %v1299 = vadd.f32 %v1214, %v1298
  %v1300 = vpop.f32.mrb[0].mxu0
  %v1301 = vpop.f32.mrb[0].mxu0
  %v1302 = vpop.f32.mrb[0].mxu0
  %1303 = vdwg.mxu0
  %v1304 = vtanh.pop %v1299
  %v1305 = vpack.c.bf16 %v1304, %v1304
  %s1306 = scalar_lea.vmem %s10, 128
  %v1307 = vld [vmem:[%s1306] sm:$0xf]
  %v1308 = vld [vmem:[%s1306 + $0x4] sm:$0xf]
  %v1309 = vld [vmem:[%s1306 + $0x8] sm:$0xf]
  %v1310 = vld [vmem:[%s1306 + $0xc] sm:$0xf]
  %v1311 = vld [vmem:[%s1306 + $0x10] sm:$0xf]
  %v1312 = vld [vmem:[%s1306 + $0x14] sm:$0xf]
  %v1313 = vld [vmem:[%s1306 + $0x18] sm:$0xf]
  %v1314 = vld [vmem:[%s1306 + $0x1c] sm:$0xf]
  %v1315 = vld [vmem:[%s1306 + $0x20] sm:$0xf]
  %v1316 = vld [vmem:[%s1306 + $0x24] sm:$0xf]
  %v1317 = vld [vmem:[%s1306 + $0x28] sm:$0xf]
  %v1318 = vld [vmem:[%s1306 + $0x2c] sm:$0xf]
  %v1319 = vld [vmem:[%s1306 + $0x30] sm:$0xf]
  %v1320 = vld [vmem:[%s1306 + $0x34] sm:$0xf]
  %v1321 = vld [vmem:[%s1306 + $0x38] sm:$0xf]
  %v1322 = vld [vmem:[%s1306 + $0x3c] sm:$0xf]
  %s1323 = scalar_lea.vmem %s11, 2
  %v1324 = vld [vmem:[%s1323] sm:$0x1]
  %v1326 = vlaneseq
  %v1327 = vshrl.u32 %v1326, 7
  %v1328 = vsub.s32 0, %v1327
  %v1329 = vrot.slane %v1324, %v1328
  %v1347 = vunpack.c.l.b16 %v1307
  %v1348 = vunpack.c.l.b16 %v1308
  %v1349 = vunpack.c.l.b16 %v1309
  %v1350 = vunpack.c.l.b16 %v1310
  %v1351 = vunpack.c.l.b16 %v1311
  %v1352 = vunpack.c.l.b16 %v1312
  %v1353 = vunpack.c.l.b16 %v1313
  %v1354 = vunpack.c.l.b16 %v1314
  %v1355 = vunpack.c.l.b16 %v1315
  %v1356 = vunpack.c.l.b16 %v1316
  %v1357 = vunpack.c.l.b16 %v1317
  %v1358 = vunpack.c.l.b16 %v1318
  %v1359 = vunpack.c.l.b16 %v1319
  %v1360 = vunpack.c.l.b16 %v1320
  %v1361 = vunpack.c.l.b16 %v1321
  %v1362 = vunpack.c.l.b16 %v1322
  %v1363 = vpack.c.b16 %v1348, %v1347
  %v1364 = vpack.c.b16 %v1350, %v1349
  %v1365 = vpack.c.b16 %v1352, %v1351
  %v1366 = vpack.c.b16 %v1354, %v1353
  %v1367 = vpack.c.b16 %v1356, %v1355
  %v1368 = vpack.c.b16 %v1358, %v1357
  %v1369 = vpack.c.b16 %v1360, %v1359
  %v1370 = vpack.c.b16 %v1362, %v1361
  %1379 = vmatprep.subr.bf16.mxu0 0
  %1380 = vmatpush1.bf16.msra.mxu0 %v1363
  %1381 = vmatprep.subr.bf16.mxu0 0
  %1382 = vmatpush1.bf16.msra.mxu0 %v1364
  %1383 = vmatprep.subr.bf16.mxu0 0
  %1384 = vmatpush1.bf16.msra.mxu0 %v1365
  %1385 = vmatprep.subr.bf16.mxu0 0
  %1386 = vmatpush1.bf16.msra.mxu0 %v1366
  %1387 = vmatprep.subr.bf16.mxu0 0
  %1388 = vmatpush1.bf16.msra.mxu0 %v1367
  %1389 = vmatprep.subr.bf16.mxu0 0
  %1390 = vmatpush1.bf16.msra.mxu0 %v1368
  %1391 = vmatprep.subr.bf16.mxu0 0
  %1392 = vmatpush1.bf16.msra.mxu0 %v1369
  %1393 = vmatprep.subr.bf16.mxu0 0
  %1394 = vmatpush1.bf16.msra.mxu0 %v1370
  %1395 = vmatprep.subr.bf16.mxu0 0
  %1396 = vmatpush1.bf16.msra.mxu0 0
  %1397 = vmatprep.subr.bf16.mxu0 0
  %1398 = vmatpush1.bf16.msra.mxu0 0
  %1399 = vmatprep.subr.bf16.mxu0 0
  %1400 = vmatpush1.bf16.msra.mxu0 0
  %1401 = vmatprep.subr.bf16.mxu0 0
  %1402 = vmatpush1.bf16.msra.mxu0 0
  %1403 = vmatprep.subr.bf16.mxu0 0
  %1404 = vmatpush1.bf16.msra.mxu0 0
  %1405 = vmatprep.subr.bf16.mxu0 0
  %1406 = vmatpush1.bf16.msra.mxu0 0
  %1407 = vmatprep.subr.bf16.mxu0 0
  %1408 = vmatpush1.bf16.msra.mxu0 0
  %1409 = vmatprep.subr.bf16.mxu0 0
  %1410 = vmatpush1.bf16.msra.mxu0 0
  %1411 = vmatprep.mubr.bf16.mxu0 0
  %1412 = vmatmul.mubr.bf16.gmra.mrb[0].mxu0 %v1305
  %v1413 = vpop.f32.mrb[0].mxu0
  %v1414 = vadd.f32 %v1329, %v1413
  %v1415 = vpop.f32.mrb[0].mxu0
  %v1416 = vpop.f32.mrb[0].mxu0
  %v1417 = vpop.f32.mrb[0].mxu0
  %1418 = vdwg.mxu0
  %v1419 = vtanh.pop %v1414
  %v1420 = vmul.f32 %v1419, %v1190
  %v1421 = vadd.f32 %v1420, %v1186
  %v1422 = vpack.c.bf16 %v1421, %v1421
  %v1423 = vld [vmem:[%s12] sm:$0xf]
  %v1424 = vld [vmem:[%s12 + $0x4] sm:$0xf]
  %v1425 = vld [vmem:[%s12 + $0x8] sm:$0xf]
  %v1426 = vld [vmem:[%s12 + $0xc] sm:$0xf]
  %v1427 = vld [vmem:[%s12 + $0x10] sm:$0xf]
  %v1428 = vld [vmem:[%s12 + $0x14] sm:$0xf]
  %v1429 = vld [vmem:[%s12 + $0x18] sm:$0xf]
  %v1430 = vld [vmem:[%s12 + $0x1c] sm:$0xf]
  %v1431 = vld [vmem:[%s12 + $0x20] sm:$0xf]
  %v1432 = vld [vmem:[%s12 + $0x24] sm:$0xf]
  %v1433 = vld [vmem:[%s12 + $0x28] sm:$0xf]
  %v1434 = vld [vmem:[%s12 + $0x2c] sm:$0xf]
  %v1435 = vld [vmem:[%s12 + $0x30] sm:$0xf]
  %v1436 = vld [vmem:[%s12 + $0x34] sm:$0xf]
  %v1437 = vld [vmem:[%s12 + $0x38] sm:$0xf]
  %v1438 = vld [vmem:[%s12 + $0x3c] sm:$0xf]
  %v1439 = vld [vmem:[%s13] sm:$0x1]
  %v1441 = vlaneseq
  %v1442 = vshrl.u32 %v1441, 7
  %v1443 = vsub.s32 0, %v1442
  %v1444 = vrot.slane %v1439, %v1443
  %v1462 = vunpack.c.l.b16 %v1423
  %v1463 = vunpack.c.l.b16 %v1424
  %v1464 = vunpack.c.l.b16 %v1425
  %v1465 = vunpack.c.l.b16 %v1426
  %v1466 = vunpack.c.l.b16 %v1427
  %v1467 = vunpack.c.l.b16 %v1428
  %v1468 = vunpack.c.l.b16 %v1429
  %v1469 = vunpack.c.l.b16 %v1430
  %v1470 = vunpack.c.l.b16 %v1431
  %v1471 = vunpack.c.l.b16 %v1432
  %v1472 = vunpack.c.l.b16 %v1433
  %v1473 = vunpack.c.l.b16 %v1434
  %v1474 = vunpack.c.l.b16 %v1435
  %v1475 = vunpack.c.l.b16 %v1436
  %v1476 = vunpack.c.l.b16 %v1437
  %v1477 = vunpack.c.l.b16 %v1438
  %v1478 = vpack.c.b16 %v1463, %v1462
  %v1479 = vpack.c.b16 %v1465, %v1464
  %v1480 = vpack.c.b16 %v1467, %v1466
  %v1481 = vpack.c.b16 %v1469, %v1468
  %v1482 = vpack.c.b16 %v1471, %v1470
  %v1483 = vpack.c.b16 %v1473, %v1472
  %v1484 = vpack.c.b16 %v1475, %v1474
  %v1485 = vpack.c.b16 %v1477, %v1476
  %1494 = vmatprep.subr.bf16.mxu0 0
  %1495 = vmatpush1.bf16.msra.mxu0 %v1478
  %1496 = vmatprep.subr.bf16.mxu0 0
  %1497 = vmatpush1.bf16.msra.mxu0 %v1479
  %1498 = vmatprep.subr.bf16.mxu0 0
  %1499 = vmatpush1.bf16.msra.mxu0 %v1480
  %1500 = vmatprep.subr.bf16.mxu0 0
  %1501 = vmatpush1.bf16.msra.mxu0 %v1481
  %1502 = vmatprep.subr.bf16.mxu0 0
  %1503 = vmatpush1.bf16.msra.mxu0 %v1482
  %1504 = vmatprep.subr.bf16.mxu0 0
  %1505 = vmatpush1.bf16.msra.mxu0 %v1483
  %1506 = vmatprep.subr.bf16.mxu0 0
  %1507 = vmatpush1.bf16.msra.mxu0 %v1484
  %1508 = vmatprep.subr.bf16.mxu0 0
  %1509 = vmatpush1.bf16.msra.mxu0 %v1485
  %1510 = vmatprep.subr.bf16.mxu0 0
  %1511 = vmatpush1.bf16.msra.mxu0 0
  %1512 = vmatprep.subr.bf16.mxu0 0
  %1513 = vmatpush1.bf16.msra.mxu0 0
  %1514 = vmatprep.subr.bf16.mxu0 0
  %1515 = vmatpush1.bf16.msra.mxu0 0
  %1516 = vmatprep.subr.bf16.mxu0 0
  %1517 = vmatpush1.bf16.msra.mxu0 0
  %1518 = vmatprep.subr.bf16.mxu0 0
  %1519 = vmatpush1.bf16.msra.mxu0 0
  %1520 = vmatprep.subr.bf16.mxu0 0
  %1521 = vmatpush1.bf16.msra.mxu0 0
  %1522 = vmatprep.subr.bf16.mxu0 0
  %1523 = vmatpush1.bf16.msra.mxu0 0
  %1524 = vmatprep.subr.bf16.mxu0 0
  %1525 = vmatpush1.bf16.msra.mxu0 0
  %1526 = vmatprep.mubr.bf16.mxu0 0
  %1527 = vmatmul.mubr.bf16.gmra.mrb[0].mxu0 %v1422
  %v1528 = vpop.f32.mrb[0].mxu0
  %v1529 = vadd.f32 %v1444, %v1528
  %v1530 = vpop.f32.mrb[0].mxu0
  %v1531 = vpop.f32.mrb[0].mxu0
  %v1532 = vpop.f32.mrb[0].mxu0
  %1533 = vdwg.mxu0
  %1534 = vst [vmem:[%s14] sm:$0xff] %v1529
  // Predicated region
  $region58: #{_lambda_.1} parent=0 // pred_check
    _
  $region59: #{_lambda_.1} parent=0 // pred_check_branch
    %1536 = sbr.rel (0) target = $region61
  $region60: #{_lambda_.1} parent=0 // pred_region
    _
  $region61: #{_lambda_.1} parent=0 // pred_fallthru
    _
  // Predicated region
  $region62: #{_lambda_.1} parent=0 // pred_check
    _
  $region63: #{_lambda_.1} parent=0 // pred_check_branch
    %1538 = sbr.rel (0) target = $region65
  $region64: #{_lambda_.1} parent=0 // pred_region
    _
  $region65: #{_lambda_.1} parent=0 // pred_fallthru
    _

</llo_original>
